<compile_context>
chip_gen: v7x
topology: tpu7x:2x2x1
jax: 0.10.0
libtpu: 0.0.40
codegen_flags: <defaults>
</compile_context>

<pallas_src>
import jax
import jax.numpy as jnp
from jax.experimental import pallas as pl
from jax.experimental.pallas import tpu as pltpu

# ----------------------------- config ---------------------------------------
B = 8            # batch (>= NUM_BLOCKS so the torch-style use_blocks[i] gating is valid)
IN_DIM = 16
HIDDEN = 32
OUT_DIM = 8
NUM_BLOCKS = 3
BLOCK_LAYERS = 2
TIME_CONSTANTS = (0.1, 0.5, 1.0, 5.0, 10.0)
LN_EPS = 1e-5

L = NUM_BLOCKS * BLOCK_LAYERS
# with state == 0 the time-constant bank folds to a single scalar multiply...
INV_TAU_MEAN = float(sum(1.0 / t for t in TIME_CONSTANTS) / len(TIME_CONSTANTS))
# ...which is itself folded into the LayerNorm epsilon (LN scale-invariance).
LN_EPS_EFF = LN_EPS / (INV_TAU_MEAN * INV_TAU_MEAN)

# --- packed-slab row offsets (all static Python ints, every group 8-aligned) --
REP = B                                   # bias/gamma/beta rows replicated to B sublanes
_WP_OFF = 0                               # [IN_DIM, H]
_WIN_OFF = _WP_OFF + IN_DIM               # L x [H, H]
_WC1_OFF = _WIN_OFF + L * HIDDEN          # [H, H]   (true cols 0:H//2)
_WC2_OFF = _WC1_OFF + HIDDEN              # [H, H]   (true [H//2, NUM_BLOCKS], rest zero)
_WO_OFF = _WC2_OFF + HIDDEN               # [H, H]   (true cols 0:OUT_DIM)
_BP_OFF = _WO_OFF + HIDDEN                # [B, H] replicated rows
_BC1_OFF = _BP_OFF + REP
_BC2_OFF = _BC1_OFF + REP
_BO_OFF = _BC2_OFF + REP
_BL_OFF = _BO_OFF + REP                   # L x [B, H]
_GAM_OFF = _BL_OFF + L * REP              # L x [B, H]
_BET_OFF = _GAM_OFF + L * REP             # L x [B, H]
SLAB_ROWS = _BET_OFF + L * REP            # 480
assert SLAB_ROWS % 8 == 0 and B % 8 == 0 and IN_DIM % 8 == 0 and HIDDEN % 8 == 0


# ----------------------------- kernel ---------------------------------------
def _lnn_kernel(x_ref, w_ref, out_ref):
    f32 = jnp.float32
    bf16 = jnp.bfloat16
    x = x_ref[...]                                                   # [B, IN]

    # ---- carve packed slab (static, 8-row-aligned slices) --------------------
    wp = w_ref[_WP_OFF:_WP_OFF + IN_DIM, :]                          # [IN, H]
    wc1 = w_ref[_WC1_OFF:_WC1_OFF + HIDDEN, :]                       # [H, H]
    wc2 = w_ref[_WC2_OFF:_WC2_OFF + HIDDEN, :]                       # [H, H]
    wo = w_ref[_WO_OFF:_WO_OFF + HIDDEN, :]                          # [H, H]

    bp = w_ref[_BP_OFF:_BP_OFF + B, :]                               # [B, H] (pre-broadcast)
    bc1 = w_ref[_BC1_OFF:_BC1_OFF + B, :]
    bc2 = w_ref[_BC2_OFF:_BC2_OFF + B, :]
    bo = w_ref[_BO_OFF:_BO_OFF + B, :]

    # ---- input projection + controller (kept f32 so the gate decision is
    # bit-comparable to the f32 reference; padded wc2/bc2 lanes are exactly 0) --
    h = jnp.maximum(jnp.dot(x, wp, preferred_element_type=f32) + bp, 0.0)       # [B, H]
    c1 = jnp.maximum(jnp.dot(h, wc1, preferred_element_type=f32) + bc1, 0.0)
    logits = jnp.dot(c1, wc2, preferred_element_type=f32) + bc2                 # [B, H]
    # sigmoid(z) > 0.5  <=>  z > 0 ; any_k(z_k > 0) <=> max_k z_k > 0.
    # Single hoisted lane-reduce; gate stays a vreg (no scalar extract).
    gates = jnp.max(logits, axis=1, keepdims=True) > 0.0                        # [B, 1] bool

    def dot_bf16(a, w):
        # bf16 MXU operands, f32 accumulation; elementwise math stays f32.
        return jnp.dot(a.astype(bf16), w.astype(bf16), preferred_element_type=f32)

    for i in range(NUM_BLOCKS):
        h_in = h
        residual = h_in
        hcur = h_in
        for j in range(BLOCK_LAYERS):
            idx = i * BLOCK_LAYERS + j
            w_in = w_ref[_WIN_OFF + idx * HIDDEN:
                         _WIN_OFF + (idx + 1) * HIDDEN, :]                      # [H, H]
            b = w_ref[_BL_OFF + idx * REP:_BL_OFF + idx * REP + B, :]           # [B, H]
            gamma = w_ref[_GAM_OFF + idx * REP:_GAM_OFF + idx * REP + B, :]     # [B, H]
            beta = w_ref[_BET_OFF + idx * REP:_BET_OFF + idx * REP + B, :]      # [B, H]

            # liquid cell with reset state (state == 0): the recurrent matmul
            # vanishes; the time-constant bank is folded into LN_EPS_EFF.
            pre = dot_bf16(hcur, w_in) + b
            s = jnp.tanh(pre)

            # LayerNorm over features; gamma folded into the rsqrt scale,
            # variance via E[x^2] - mu^2 (one pass over s).
            mu = jnp.mean(s, axis=-1, keepdims=True)
            var = jnp.mean(s * s, axis=-1, keepdims=True) - mu * mu
            scale = jax.lax.rsqrt(var + LN_EPS_EFF) * gamma
            y = (s - mu) * scale + beta

            # dropout is identity in eval mode
            if j > 0:  # LiquidBlock residual: applied for layer index > 0
                y = y + residual
                residual = y
            hcur = y

        # predicated block skip — vector select, torch quirk preserved
        # (block i gated by batch row i of the controller output).
        h = jnp.where(gates[i:i + 1, :], hcur, h_in)

    # ---- output projection: write the full lane-dense [B, H] slab ------------
    out_ref[...] = (dot_bf16(h, wo) + bo).astype(out_ref.dtype)


# ----------------------------- wrapper ---------------------------------------
@jax.jit
def liquid_nn_forward(x, slab):
    """x: [N, B, IN_DIM] -> [N, B, OUT_DIM]. N forward passes in one pallas_call;
    the parameter slab is DMA'd once and stays VMEM-resident across the grid."""
    N = x.shape[0]
    assert x.shape == (N, B, IN_DIM)
    assert B >= NUM_BLOCKS, "torch-style use_blocks[i] gating indexes batch row i"
    assert slab.shape == (SLAB_ROWS, HIDDEN)

    cost = pl.CostEstimate(
        flops=int(N * 2 * B * HIDDEN * HIDDEN * (L + 4)),
        transcendentals=int(N * B * HIDDEN * L),
        bytes_accessed=int(SLAB_ROWS * HIDDEN * 4 + N * B * (IN_DIM + HIDDEN) * 4),
    )

    out_full = pl.pallas_call(
        _lnn_kernel,
        out_shape=jax.ShapeDtypeStruct((N, B, HIDDEN), jnp.float32),
        grid=(N,),
        in_specs=[
            pl.BlockSpec((None, B, IN_DIM), lambda n: (n, 0, 0)),     # x streams per step
            pl.BlockSpec((SLAB_ROWS, HIDDEN), lambda n: (0, 0)),      # weights resident
        ],
        out_specs=pl.BlockSpec((None, B, HIDDEN), lambda n: (n, 0, 0)),
        compiler_params=pltpu.CompilerParams(
            dimension_semantics=("parallel",)),                       # v7x: shard over 2 TCs
        cost_estimate=cost,
    )(x, slab)
    # lane-dense store in the kernel; the narrow OUT_DIM slice is free here.
    return out_full[:, :, :OUT_DIM]


# ----------------------------- params / packing ------------------------------
def init_params(key):
    ks = jax.random.split(key, 12)
    n = lambda k, shape, s=0.1: (s * jax.random.normal(k, shape)).astype(jnp.float32)
    return {
        "wp": n(ks[0], (IN_DIM, HIDDEN)),
        "bp": n(ks[1], (1, HIDDEN)),
        "wc1": n(ks[2], (HIDDEN, HIDDEN // 2)),
        "bc1": n(ks[3], (1, HIDDEN // 2)),
        "wc2": n(ks[4], (HIDDEN // 2, NUM_BLOCKS)),
        "bc2": n(ks[5], (1, NUM_BLOCKS)),
        "win": n(ks[6], (L, HIDDEN, HIDDEN)),
        # NB: no "wrec" — with reset state the recurrent term is identically zero.
        "bl": n(ks[7], (L, 1, HIDDEN)),
        "gam": jnp.ones((L, 1, HIDDEN), jnp.float32),
        "bet": jnp.zeros((L, 1, HIDDEN), jnp.float32),
        "wo": n(ks[8], (HIDDEN, OUT_DIM)),
        "bo": n(ks[9], (1, OUT_DIM)),
    }


def pack_params(p):
    """Pack all parameters into ONE slab. Matrices are zero-padded to HIDDEN
    columns; bias/gamma/beta rows are zero-padded to HIDDEN columns and
    replicated to B sublanes so every kernel slice is an aligned full tile.
    The zero-padding of wc2/bc2 is load-bearing for the gate logic (z > 0)."""
    H = HIDDEN

    def pad_cols(w):
        return jnp.pad(w, ((0, 0), (0, H - w.shape[1])))

    def rep_vec(v):
        v = jnp.pad(v.reshape(1, -1), ((0, 0), (0, H - v.size)))
        return jnp.tile(v, (REP, 1))

    parts = [
        pad_cols(p["wp"]),                                            # [IN, H]
        p["win"].reshape(L * H, H),                                   # [L*H, H]
        pad_cols(p["wc1"]),                                           # [H, H]
        jnp.pad(p["wc2"], ((0, H - p["wc2"].shape[0]),
                           (0, H - p["wc2"].shape[1]))),              # [H, H]
        pad_cols(p["wo"]),                                            # [H, H]
        rep_vec(p["bp"]), rep_vec(p["bc1"]), rep_vec(p["bc2"]), rep_vec(p["bo"]),
    ]
    parts += [rep_vec(p["bl"][i]) for i in range(L)]
    parts += [rep_vec(p["gam"][i]) for i in range(L)]
    parts += [rep_vec(p["bet"][i]) for i in range(L)]

    slab = jnp.concatenate(parts, axis=0).astype(jnp.float32)
    assert slab.shape == (SLAB_ROWS, H)
    return slab


# ----------------------------- pure-JAX reference ----------------------------
def lnn_reference(x, p):
    """Faithful (un-optimized, f32) forward pass for correctness checking."""
    relu = jax.nn.relu
    h = relu(x @ p["wp"] + p["bp"])
    c1 = relu(h @ p["wc1"] + p["bc1"])
    imp = jax.nn.sigmoid(c1 @ p["wc2"] + p["bc2"])
    use_blocks = imp > 0.5
    for i in range(NUM_BLOCKS):
        gate = jnp.any(use_blocks[i, :])           # torch quirk: batch row i
        h_in = h
        residual = h_in
        hcur = h_in
        for j in range(BLOCK_LAYERS):
            idx = i * BLOCK_LAYERS + j
            state = jnp.zeros_like(hcur)           # reset_state=True path
            pre = hcur @ p["win"][idx] + p["bl"][idx]   # (state @ w_rec == 0)
            act = jnp.tanh(pre)
            new_state = jnp.mean(
                jnp.stack([state + (1.0 / t) * (act - state) for t in TIME_CONSTANTS]),
                axis=0)
            mu = new_state.mean(-1, keepdims=True)
            var = ((new_state - mu) ** 2).mean(-1, keepdims=True)
            y = (new_state - mu) / jnp.sqrt(var + LN_EPS) * p["gam"][idx] + p["bet"][idx]
            if j > 0:
                y = y + residual
                residual = y
            hcur = y
        h = jnp.where(gate, hcur, h_in)
    return h @ p["wo"] + p["bo"]


# ----------------------------- main -------------------------------------------
if __name__ == "__main__":
    key = jax.random.PRNGKey(0)
    kx, kp = jax.random.split(key)
    N = 4                                           # independent forward passes in one call
    x = jax.random.normal(kx, (N, B, IN_DIM), dtype=jnp.float32)
    params = init_params(kp)
    slab = pack_params(params)

    out = liquid_nn_forward(x, slab)
    out = jax.block_until_ready(out)

    assert out.shape == (N, B, OUT_DIM) and out.dtype == jnp.float32
    assert bool(jnp.all(jnp.isfinite(out)))

    ref = jnp.stack([lnn_reference(x[n], params) for n in range(N)])
    max_err = float(jnp.max(jnp.abs(out - ref)))
    # tolerance absorbs bf16-MXU matmul rounding vs the f32 reference; structural
    # (packing/offset/gate) bugs would produce O(1) errors.
    assert max_err < 1e-1, f"kernel vs reference max abs err = {max_err}"

    print("KERNEL_OK")
</pallas_src>

<mosaic_0001>
module attributes {stable_mosaic.version = 11 : i64} {
  func.func @_lnn_kernel(%arg0: i32, %arg1: memref<1x8x16xf32, #tpu.memory_space<vmem>>, %arg2: memref<480x32xf32, #tpu.memory_space<vmem>>, %arg3: memref<1x8x32xf32, #tpu.memory_space<vmem>>) attributes {dimension_semantics = [#tpu.dimension_semantics<parallel>], iteration_bounds = array<i64: 4>, scalar_prefetch = 0 : i64, scratch_operands = 0 : i64, tpu.core_type = #tpu.core_type<tc>, window_params = [{transform_indices = @transform_0, window_bounds = array<i64: 1, 8, 16>}, {pipeline_mode = #tpu.pipeline_mode<synchronous>, transform_indices = @transform_1, window_bounds = array<i64: 480, 32>}, {transform_indices = @transform_2, window_bounds = array<i64: 1, 8, 32>}]} {
    %c0 = arith.constant 0 : index
    %c0_0 = arith.constant 0 : index
    %c0_1 = arith.constant 0 : index
    %0 = vector.load %arg1[%c0, %c0_0, %c0_1] : memref<1x8x16xf32, #tpu.memory_space<vmem>>, vector<1x8x16xf32>
    %1 = vector.shape_cast %0 : vector<1x8x16xf32> to vector<8x16xf32>
    %c0_2 = arith.constant 0 : index
    %c0_3 = arith.constant 0 : index
    %2 = vector.load %arg2[%c0_2, %c0_3] : memref<480x32xf32, #tpu.memory_space<vmem>>, vector<16x32xf32>
    %c208 = arith.constant 208 : index
    %c0_4 = arith.constant 0 : index
    %3 = vector.load %arg2[%c208, %c0_4] : memref<480x32xf32, #tpu.memory_space<vmem>>, vector<32x32xf32>
    %c240 = arith.constant 240 : index
    %c0_5 = arith.constant 0 : index
    %4 = vector.load %arg2[%c240, %c0_5] : memref<480x32xf32, #tpu.memory_space<vmem>>, vector<32x32xf32>
    %c272 = arith.constant 272 : index
    %c0_6 = arith.constant 0 : index
    %5 = vector.load %arg2[%c272, %c0_6] : memref<480x32xf32, #tpu.memory_space<vmem>>, vector<32x32xf32>
    %c304 = arith.constant 304 : index
    %c0_7 = arith.constant 0 : index
    %6 = vector.load %arg2[%c304, %c0_7] : memref<480x32xf32, #tpu.memory_space<vmem>>, vector<8x32xf32>
    %c312 = arith.constant 312 : index
    %c0_8 = arith.constant 0 : index
    %7 = vector.load %arg2[%c312, %c0_8] : memref<480x32xf32, #tpu.memory_space<vmem>>, vector<8x32xf32>
    %c320 = arith.constant 320 : index
    %c0_9 = arith.constant 0 : index
    %8 = vector.load %arg2[%c320, %c0_9] : memref<480x32xf32, #tpu.memory_space<vmem>>, vector<8x32xf32>
    %c328 = arith.constant 328 : index
    %c0_10 = arith.constant 0 : index
    %9 = vector.load %arg2[%c328, %c0_10] : memref<480x32xf32, #tpu.memory_space<vmem>>, vector<8x32xf32>
    %cst = arith.constant dense<0.000000e+00> : vector<8x32xf32>
    %10 = tpu.matmul %1, %2, %cst {dimension_numbers = #tpu.dot_dimension_numbers<[1], [0], [0], [1], [0, 0, 1, 1], [], []>} : vector<8x16xf32>, vector<16x32xf32>, vector<8x32xf32> -> vector<8x32xf32>
    %11 = arith.addf %10, %6 : vector<8x32xf32>
    %cst_11 = arith.constant 0.000000e+00 : f32
    %12 = vector.broadcast %cst_11 : f32 to vector<8x32xf32>
    %13 = arith.maximumf %11, %12 : vector<8x32xf32>
    %cst_12 = arith.constant dense<0.000000e+00> : vector<8x32xf32>
    %14 = tpu.matmul %13, %3, %cst_12 {dimension_numbers = #tpu.dot_dimension_numbers<[1], [0], [0], [1], [0, 0, 1, 1], [], []>} : vector<8x32xf32>, vector<32x32xf32>, vector<8x32xf32> -> vector<8x32xf32>
    %15 = arith.addf %14, %7 : vector<8x32xf32>
    %cst_13 = arith.constant 0.000000e+00 : f32
    %16 = vector.broadcast %cst_13 : f32 to vector<8x32xf32>
    %17 = arith.maximumf %15, %16 : vector<8x32xf32>
    %cst_14 = arith.constant dense<0.000000e+00> : vector<8x32xf32>
    %18 = tpu.matmul %17, %4, %cst_14 {dimension_numbers = #tpu.dot_dimension_numbers<[1], [0], [0], [1], [0, 0, 1, 1], [], []>} : vector<8x32xf32>, vector<32x32xf32>, vector<8x32xf32> -> vector<8x32xf32>
    %19 = arith.addf %18, %8 : vector<8x32xf32>
    %cst_15 = arith.constant dense<0xFF800000> : vector<8xf32>
    %20 = vector.multi_reduction <maximumf>, %19, %cst_15 [1] : vector<8x32xf32> to vector<8xf32>
    %21 = vector.shape_cast %20 : vector<8xf32> to vector<8x1xf32>
    %cst_16 = arith.constant 0.000000e+00 : f32
    %22 = vector.broadcast %cst_16 : f32 to vector<8x1xf32>
    %23 = arith.cmpf ogt, %21, %22 : vector<8x1xf32>
    %c16 = arith.constant 16 : index
    %c0_17 = arith.constant 0 : index
    %24 = vector.load %arg2[%c16, %c0_17] : memref<480x32xf32, #tpu.memory_space<vmem>>, vector<32x32xf32>
    %c336 = arith.constant 336 : index
    %c0_18 = arith.constant 0 : index
    %25 = vector.load %arg2[%c336, %c0_18] : memref<480x32xf32, #tpu.memory_space<vmem>>, vector<8x32xf32>
    %c384 = arith.constant 384 : index
    %c0_19 = arith.constant 0 : index
    %26 = vector.load %arg2[%c384, %c0_19] : memref<480x32xf32, #tpu.memory_space<vmem>>, vector<8x32xf32>
    %c432 = arith.constant 432 : index
    %c0_20 = arith.constant 0 : index
    %27 = vector.load %arg2[%c432, %c0_20] : memref<480x32xf32, #tpu.memory_space<vmem>>, vector<8x32xf32>
    %28 = arith.truncf %13 : vector<8x32xf32> to vector<8x32xbf16>
    %29 = arith.truncf %24 : vector<32x32xf32> to vector<32x32xbf16>
    %cst_21 = arith.constant dense<0.000000e+00> : vector<8x32xf32>
    %30 = tpu.matmul %28, %29, %cst_21 {dimension_numbers = #tpu.dot_dimension_numbers<[1], [0], [0], [1], [0, 0, 1, 1], [], []>} : vector<8x32xbf16>, vector<32x32xbf16>, vector<8x32xf32> -> vector<8x32xf32>
    %31 = arith.addf %30, %25 : vector<8x32xf32>
    %32 = math.tanh %31 : vector<8x32xf32>
    %cst_22 = arith.constant dense<0.000000e+00> : vector<8xf32>
    %33 = vector.multi_reduction <add>, %32, %cst_22 [1] : vector<8x32xf32> to vector<8xf32>
    %34 = vector.shape_cast %33 : vector<8xf32> to vector<8x1xf32>
    %cst_23 = arith.constant 3.200000e+01 : f32
    %35 = vector.broadcast %cst_23 : f32 to vector<8x1xf32>
    %36 = arith.divf %34, %35 : vector<8x1xf32>
    %37 = arith.mulf %32, %32 : vector<8x32xf32>
    %cst_24 = arith.constant dense<0.000000e+00> : vector<8xf32>
    %38 = vector.multi_reduction <add>, %37, %cst_24 [1] : vector<8x32xf32> to vector<8xf32>
    %39 = vector.shape_cast %38 : vector<8xf32> to vector<8x1xf32>
    %cst_25 = arith.constant 3.200000e+01 : f32
    %40 = vector.broadcast %cst_25 : f32 to vector<8x1xf32>
    %41 = arith.divf %39, %40 : vector<8x1xf32>
    %42 = arith.mulf %36, %36 : vector<8x1xf32>
    %43 = arith.subf %41, %42 : vector<8x1xf32>
    %cst_26 = arith.constant 1.4133077E-6 : f32
    %44 = vector.broadcast %cst_26 : f32 to vector<8x1xf32>
    %45 = arith.addf %43, %44 : vector<8x1xf32>
    %46 = math.rsqrt %45 : vector<8x1xf32>
    %47 = vector.broadcast %46 : vector<8x1xf32> to vector<8x32xf32>
    %48 = arith.mulf %47, %26 : vector<8x32xf32>
    %49 = vector.broadcast %36 : vector<8x1xf32> to vector<8x32xf32>
    %50 = arith.subf %32, %49 : vector<8x32xf32>
    %51 = arith.mulf %50, %48 : vector<8x32xf32>
    %52 = arith.addf %51, %27 : vector<8x32xf32>
    %c48 = arith.constant 48 : index
    %c0_27 = arith.constant 0 : index
    %53 = vector.load %arg2[%c48, %c0_27] : memref<480x32xf32, #tpu.memory_space<vmem>>, vector<32x32xf32>
    %c344 = arith.constant 344 : index
    %c0_28 = arith.constant 0 : index
    %54 = vector.load %arg2[%c344, %c0_28] : memref<480x32xf32, #tpu.memory_space<vmem>>, vector<8x32xf32>
    %c392 = arith.constant 392 : index
    %c0_29 = arith.constant 0 : index
    %55 = vector.load %arg2[%c392, %c0_29] : memref<480x32xf32, #tpu.memory_space<vmem>>, vector<8x32xf32>
    %c440 = arith.constant 440 : index
    %c0_30 = arith.constant 0 : index
    %56 = vector.load %arg2[%c440, %c0_30] : memref<480x32xf32, #tpu.memory_space<vmem>>, vector<8x32xf32>
    %57 = arith.truncf %52 : vector<8x32xf32> to vector<8x32xbf16>
    %58 = arith.truncf %53 : vector<32x32xf32> to vector<32x32xbf16>
    %cst_31 = arith.constant dense<0.000000e+00> : vector<8x32xf32>
    %59 = tpu.matmul %57, %58, %cst_31 {dimension_numbers = #tpu.dot_dimension_numbers<[1], [0], [0], [1], [0, 0, 1, 1], [], []>} : vector<8x32xbf16>, vector<32x32xbf16>, vector<8x32xf32> -> vector<8x32xf32>
    %60 = arith.addf %59, %54 : vector<8x32xf32>
    %61 = math.tanh %60 : vector<8x32xf32>
    %cst_32 = arith.constant dense<0.000000e+00> : vector<8xf32>
    %62 = vector.multi_reduction <add>, %61, %cst_32 [1] : vector<8x32xf32> to vector<8xf32>
    %63 = vector.shape_cast %62 : vector<8xf32> to vector<8x1xf32>
    %cst_33 = arith.constant 3.200000e+01 : f32
    %64 = vector.broadcast %cst_33 : f32 to vector<8x1xf32>
    %65 = arith.divf %63, %64 : vector<8x1xf32>
    %66 = arith.mulf %61, %61 : vector<8x32xf32>
    %cst_34 = arith.constant dense<0.000000e+00> : vector<8xf32>
    %67 = vector.multi_reduction <add>, %66, %cst_34 [1] : vector<8x32xf32> to vector<8xf32>
    %68 = vector.shape_cast %67 : vector<8xf32> to vector<8x1xf32>
    %cst_35 = arith.constant 3.200000e+01 : f32
    %69 = vector.broadcast %cst_35 : f32 to vector<8x1xf32>
    %70 = arith.divf %68, %69 : vector<8x1xf32>
    %71 = arith.mulf %65, %65 : vector<8x1xf32>
    %72 = arith.subf %70, %71 : vector<8x1xf32>
    %cst_36 = arith.constant 1.4133077E-6 : f32
    %73 = vector.broadcast %cst_36 : f32 to vector<8x1xf32>
    %74 = arith.addf %72, %73 : vector<8x1xf32>
    %75 = math.rsqrt %74 : vector<8x1xf32>
    %76 = vector.broadcast %75 : vector<8x1xf32> to vector<8x32xf32>
    %77 = arith.mulf %76, %55 : vector<8x32xf32>
    %78 = vector.broadcast %65 : vector<8x1xf32> to vector<8x32xf32>
    %79 = arith.subf %61, %78 : vector<8x32xf32>
    %80 = arith.mulf %79, %77 : vector<8x32xf32>
    %81 = arith.addf %80, %56 : vector<8x32xf32>
    %82 = arith.addf %81, %13 : vector<8x32xf32>
    %83 = vector.extract_strided_slice %23 {offsets = [0, 0], sizes = [1, 1], strides = [1, 1]} : vector<8x1xi1> to vector<1x1xi1>
    %84 = vector.shape_cast %83 : vector<1x1xi1> to vector<1x1xi1>
    %85 = vector.broadcast %84 : vector<1x1xi1> to vector<8x32xi1>
    %86 = arith.select %85, %82, %13 : vector<8x32xi1>, vector<8x32xf32>
    %c80 = arith.constant 80 : index
    %c0_37 = arith.constant 0 : index
    %87 = vector.load %arg2[%c80, %c0_37] : memref<480x32xf32, #tpu.memory_space<vmem>>, vector<32x32xf32>
    %c352 = arith.constant 352 : index
    %c0_38 = arith.constant 0 : index
    %88 = vector.load %arg2[%c352, %c0_38] : memref<480x32xf32, #tpu.memory_space<vmem>>, vector<8x32xf32>
    %c400 = arith.constant 400 : index
    %c0_39 = arith.constant 0 : index
    %89 = vector.load %arg2[%c400, %c0_39] : memref<480x32xf32, #tpu.memory_space<vmem>>, vector<8x32xf32>
    %c448 = arith.constant 448 : index
    %c0_40 = arith.constant 0 : index
    %90 = vector.load %arg2[%c448, %c0_40] : memref<480x32xf32, #tpu.memory_space<vmem>>, vector<8x32xf32>
    %91 = arith.truncf %86 : vector<8x32xf32> to vector<8x32xbf16>
    %92 = arith.truncf %87 : vector<32x32xf32> to vector<32x32xbf16>
    %cst_41 = arith.constant dense<0.000000e+00> : vector<8x32xf32>
    %93 = tpu.matmul %91, %92, %cst_41 {dimension_numbers = #tpu.dot_dimension_numbers<[1], [0], [0], [1], [0, 0, 1, 1], [], []>} : vector<8x32xbf16>, vector<32x32xbf16>, vector<8x32xf32> -> vector<8x32xf32>
    %94 = arith.addf %93, %88 : vector<8x32xf32>
    %95 = math.tanh %94 : vector<8x32xf32>
    %cst_42 = arith.constant dense<0.000000e+00> : vector<8xf32>
    %96 = vector.multi_reduction <add>, %95, %cst_42 [1] : vector<8x32xf32> to vector<8xf32>
    %97 = vector.shape_cast %96 : vector<8xf32> to vector<8x1xf32>
    %cst_43 = arith.constant 3.200000e+01 : f32
    %98 = vector.broadcast %cst_43 : f32 to vector<8x1xf32>
    %99 = arith.divf %97, %98 : vector<8x1xf32>
    %100 = arith.mulf %95, %95 : vector<8x32xf32>
    %cst_44 = arith.constant dense<0.000000e+00> : vector<8xf32>
    %101 = vector.multi_reduction <add>, %100, %cst_44 [1] : vector<8x32xf32> to vector<8xf32>
    %102 = vector.shape_cast %101 : vector<8xf32> to vector<8x1xf32>
    %cst_45 = arith.constant 3.200000e+01 : f32
    %103 = vector.broadcast %cst_45 : f32 to vector<8x1xf32>
    %104 = arith.divf %102, %103 : vector<8x1xf32>
    %105 = arith.mulf %99, %99 : vector<8x1xf32>
    %106 = arith.subf %104, %105 : vector<8x1xf32>
    %cst_46 = arith.constant 1.4133077E-6 : f32
    %107 = vector.broadcast %cst_46 : f32 to vector<8x1xf32>
    %108 = arith.addf %106, %107 : vector<8x1xf32>
    %109 = math.rsqrt %108 : vector<8x1xf32>
    %110 = vector.broadcast %109 : vector<8x1xf32> to vector<8x32xf32>
    %111 = arith.mulf %110, %89 : vector<8x32xf32>
    %112 = vector.broadcast %99 : vector<8x1xf32> to vector<8x32xf32>
    %113 = arith.subf %95, %112 : vector<8x32xf32>
    %114 = arith.mulf %113, %111 : vector<8x32xf32>
    %115 = arith.addf %114, %90 : vector<8x32xf32>
    %c112 = arith.constant 112 : index
    %c0_47 = arith.constant 0 : index
    %116 = vector.load %arg2[%c112, %c0_47] : memref<480x32xf32, #tpu.memory_space<vmem>>, vector<32x32xf32>
    %c360 = arith.constant 360 : index
    %c0_48 = arith.constant 0 : index
    %117 = vector.load %arg2[%c360, %c0_48] : memref<480x32xf32, #tpu.memory_space<vmem>>, vector<8x32xf32>
    %c408 = arith.constant 408 : index
    %c0_49 = arith.constant 0 : index
    %118 = vector.load %arg2[%c408, %c0_49] : memref<480x32xf32, #tpu.memory_space<vmem>>, vector<8x32xf32>
    %c456 = arith.constant 456 : index
    %c0_50 = arith.constant 0 : index
    %119 = vector.load %arg2[%c456, %c0_50] : memref<480x32xf32, #tpu.memory_space<vmem>>, vector<8x32xf32>
    %120 = arith.truncf %115 : vector<8x32xf32> to vector<8x32xbf16>
    %121 = arith.truncf %116 : vector<32x32xf32> to vector<32x32xbf16>
    %cst_51 = arith.constant dense<0.000000e+00> : vector<8x32xf32>
    %122 = tpu.matmul %120, %121, %cst_51 {dimension_numbers = #tpu.dot_dimension_numbers<[1], [0], [0], [1], [0, 0, 1, 1], [], []>} : vector<8x32xbf16>, vector<32x32xbf16>, vector<8x32xf32> -> vector<8x32xf32>
    %123 = arith.addf %122, %117 : vector<8x32xf32>
    %124 = math.tanh %123 : vector<8x32xf32>
    %cst_52 = arith.constant dense<0.000000e+00> : vector<8xf32>
    %125 = vector.multi_reduction <add>, %124, %cst_52 [1] : vector<8x32xf32> to vector<8xf32>
    %126 = vector.shape_cast %125 : vector<8xf32> to vector<8x1xf32>
    %cst_53 = arith.constant 3.200000e+01 : f32
    %127 = vector.broadcast %cst_53 : f32 to vector<8x1xf32>
    %128 = arith.divf %126, %127 : vector<8x1xf32>
    %129 = arith.mulf %124, %124 : vector<8x32xf32>
    %cst_54 = arith.constant dense<0.000000e+00> : vector<8xf32>
    %130 = vector.multi_reduction <add>, %129, %cst_54 [1] : vector<8x32xf32> to vector<8xf32>
    %131 = vector.shape_cast %130 : vector<8xf32> to vector<8x1xf32>
    %cst_55 = arith.constant 3.200000e+01 : f32
    %132 = vector.broadcast %cst_55 : f32 to vector<8x1xf32>
    %133 = arith.divf %131, %132 : vector<8x1xf32>
    %134 = arith.mulf %128, %128 : vector<8x1xf32>
    %135 = arith.subf %133, %134 : vector<8x1xf32>
    %cst_56 = arith.constant 1.4133077E-6 : f32
    %136 = vector.broadcast %cst_56 : f32 to vector<8x1xf32>
    %137 = arith.addf %135, %136 : vector<8x1xf32>
    %138 = math.rsqrt %137 : vector<8x1xf32>
    %139 = vector.broadcast %138 : vector<8x1xf32> to vector<8x32xf32>
    %140 = arith.mulf %139, %118 : vector<8x32xf32>
    %141 = vector.broadcast %128 : vector<8x1xf32> to vector<8x32xf32>
    %142 = arith.subf %124, %141 : vector<8x32xf32>
    %143 = arith.mulf %142, %140 : vector<8x32xf32>
    %144 = arith.addf %143, %119 : vector<8x32xf32>
    %145 = arith.addf %144, %86 : vector<8x32xf32>
    %146 = vector.extract_strided_slice %23 {offsets = [1, 0], sizes = [1, 1], strides = [1, 1]} : vector<8x1xi1> to vector<1x1xi1>
    %147 = vector.shape_cast %146 : vector<1x1xi1> to vector<1x1xi1>
    %148 = vector.broadcast %147 : vector<1x1xi1> to vector<8x32xi1>
    %149 = arith.select %148, %145, %86 : vector<8x32xi1>, vector<8x32xf32>
    %c144 = arith.constant 144 : index
    %c0_57 = arith.constant 0 : index
    %150 = vector.load %arg2[%c144, %c0_57] : memref<480x32xf32, #tpu.memory_space<vmem>>, vector<32x32xf32>
    %c368 = arith.constant 368 : index
    %c0_58 = arith.constant 0 : index
    %151 = vector.load %arg2[%c368, %c0_58] : memref<480x32xf32, #tpu.memory_space<vmem>>, vector<8x32xf32>
    %c416 = arith.constant 416 : index
    %c0_59 = arith.constant 0 : index
    %152 = vector.load %arg2[%c416, %c0_59] : memref<480x32xf32, #tpu.memory_space<vmem>>, vector<8x32xf32>
    %c464 = arith.constant 464 : index
    %c0_60 = arith.constant 0 : index
    %153 = vector.load %arg2[%c464, %c0_60] : memref<480x32xf32, #tpu.memory_space<vmem>>, vector<8x32xf32>
    %154 = arith.truncf %149 : vector<8x32xf32> to vector<8x32xbf16>
    %155 = arith.truncf %150 : vector<32x32xf32> to vector<32x32xbf16>
    %cst_61 = arith.constant dense<0.000000e+00> : vector<8x32xf32>
    %156 = tpu.matmul %154, %155, %cst_61 {dimension_numbers = #tpu.dot_dimension_numbers<[1], [0], [0], [1], [0, 0, 1, 1], [], []>} : vector<8x32xbf16>, vector<32x32xbf16>, vector<8x32xf32> -> vector<8x32xf32>
    %157 = arith.addf %156, %151 : vector<8x32xf32>
    %158 = math.tanh %157 : vector<8x32xf32>
    %cst_62 = arith.constant dense<0.000000e+00> : vector<8xf32>
    %159 = vector.multi_reduction <add>, %158, %cst_62 [1] : vector<8x32xf32> to vector<8xf32>
    %160 = vector.shape_cast %159 : vector<8xf32> to vector<8x1xf32>
    %cst_63 = arith.constant 3.200000e+01 : f32
    %161 = vector.broadcast %cst_63 : f32 to vector<8x1xf32>
    %162 = arith.divf %160, %161 : vector<8x1xf32>
    %163 = arith.mulf %158, %158 : vector<8x32xf32>
    %cst_64 = arith.constant dense<0.000000e+00> : vector<8xf32>
    %164 = vector.multi_reduction <add>, %163, %cst_64 [1] : vector<8x32xf32> to vector<8xf32>
    %165 = vector.shape_cast %164 : vector<8xf32> to vector<8x1xf32>
    %cst_65 = arith.constant 3.200000e+01 : f32
    %166 = vector.broadcast %cst_65 : f32 to vector<8x1xf32>
    %167 = arith.divf %165, %166 : vector<8x1xf32>
    %168 = arith.mulf %162, %162 : vector<8x1xf32>
    %169 = arith.subf %167, %168 : vector<8x1xf32>
    %cst_66 = arith.constant 1.4133077E-6 : f32
    %170 = vector.broadcast %cst_66 : f32 to vector<8x1xf32>
    %171 = arith.addf %169, %170 : vector<8x1xf32>
    %172 = math.rsqrt %171 : vector<8x1xf32>
    %173 = vector.broadcast %172 : vector<8x1xf32> to vector<8x32xf32>
    %174 = arith.mulf %173, %152 : vector<8x32xf32>
    %175 = vector.broadcast %162 : vector<8x1xf32> to vector<8x32xf32>
    %176 = arith.subf %158, %175 : vector<8x32xf32>
    %177 = arith.mulf %176, %174 : vector<8x32xf32>
    %178 = arith.addf %177, %153 : vector<8x32xf32>
    %c176 = arith.constant 176 : index
    %c0_67 = arith.constant 0 : index
    %179 = vector.load %arg2[%c176, %c0_67] : memref<480x32xf32, #tpu.memory_space<vmem>>, vector<32x32xf32>
    %c376 = arith.constant 376 : index
    %c0_68 = arith.constant 0 : index
    %180 = vector.load %arg2[%c376, %c0_68] : memref<480x32xf32, #tpu.memory_space<vmem>>, vector<8x32xf32>
    %c424 = arith.constant 424 : index
    %c0_69 = arith.constant 0 : index
    %181 = vector.load %arg2[%c424, %c0_69] : memref<480x32xf32, #tpu.memory_space<vmem>>, vector<8x32xf32>
    %c472 = arith.constant 472 : index
    %c0_70 = arith.constant 0 : index
    %182 = vector.load %arg2[%c472, %c0_70] : memref<480x32xf32, #tpu.memory_space<vmem>>, vector<8x32xf32>
    %183 = arith.truncf %178 : vector<8x32xf32> to vector<8x32xbf16>
    %184 = arith.truncf %179 : vector<32x32xf32> to vector<32x32xbf16>
    %cst_71 = arith.constant dense<0.000000e+00> : vector<8x32xf32>
    %185 = tpu.matmul %183, %184, %cst_71 {dimension_numbers = #tpu.dot_dimension_numbers<[1], [0], [0], [1], [0, 0, 1, 1], [], []>} : vector<8x32xbf16>, vector<32x32xbf16>, vector<8x32xf32> -> vector<8x32xf32>
    %186 = arith.addf %185, %180 : vector<8x32xf32>
    %187 = math.tanh %186 : vector<8x32xf32>
    %cst_72 = arith.constant dense<0.000000e+00> : vector<8xf32>
    %188 = vector.multi_reduction <add>, %187, %cst_72 [1] : vector<8x32xf32> to vector<8xf32>
    %189 = vector.shape_cast %188 : vector<8xf32> to vector<8x1xf32>
    %cst_73 = arith.constant 3.200000e+01 : f32
    %190 = vector.broadcast %cst_73 : f32 to vector<8x1xf32>
    %191 = arith.divf %189, %190 : vector<8x1xf32>
    %192 = arith.mulf %187, %187 : vector<8x32xf32>
    %cst_74 = arith.constant dense<0.000000e+00> : vector<8xf32>
    %193 = vector.multi_reduction <add>, %192, %cst_74 [1] : vector<8x32xf32> to vector<8xf32>
    %194 = vector.shape_cast %193 : vector<8xf32> to vector<8x1xf32>
    %cst_75 = arith.constant 3.200000e+01 : f32
    %195 = vector.broadcast %cst_75 : f32 to vector<8x1xf32>
    %196 = arith.divf %194, %195 : vector<8x1xf32>
    %197 = arith.mulf %191, %191 : vector<8x1xf32>
    %198 = arith.subf %196, %197 : vector<8x1xf32>
    %cst_76 = arith.constant 1.4133077E-6 : f32
    %199 = vector.broadcast %cst_76 : f32 to vector<8x1xf32>
    %200 = arith.addf %198, %199 : vector<8x1xf32>
    %201 = math.rsqrt %200 : vector<8x1xf32>
    %202 = vector.broadcast %201 : vector<8x1xf32> to vector<8x32xf32>
    %203 = arith.mulf %202, %181 : vector<8x32xf32>
    %204 = vector.broadcast %191 : vector<8x1xf32> to vector<8x32xf32>
    %205 = arith.subf %187, %204 : vector<8x32xf32>
    %206 = arith.mulf %205, %203 : vector<8x32xf32>
    %207 = arith.addf %206, %182 : vector<8x32xf32>
    %208 = arith.addf %207, %149 : vector<8x32xf32>
    %209 = vector.extract_strided_slice %23 {offsets = [2, 0], sizes = [1, 1], strides = [1, 1]} : vector<8x1xi1> to vector<1x1xi1>
    %210 = vector.shape_cast %209 : vector<1x1xi1> to vector<1x1xi1>
    %211 = vector.broadcast %210 : vector<1x1xi1> to vector<8x32xi1>
    %212 = arith.select %211, %208, %149 : vector<8x32xi1>, vector<8x32xf32>
    %213 = arith.truncf %212 : vector<8x32xf32> to vector<8x32xbf16>
    %214 = arith.truncf %5 : vector<32x32xf32> to vector<32x32xbf16>
    %cst_77 = arith.constant dense<0.000000e+00> : vector<8x32xf32>
    %215 = tpu.matmul %213, %214, %cst_77 {dimension_numbers = #tpu.dot_dimension_numbers<[1], [0], [0], [1], [0, 0, 1, 1], [], []>} : vector<8x32xbf16>, vector<32x32xbf16>, vector<8x32xf32> -> vector<8x32xf32>
    %216 = arith.addf %215, %9 : vector<8x32xf32>
    %c0_78 = arith.constant 0 : index
    %c0_79 = arith.constant 0 : index
    %c0_80 = arith.constant 0 : index
    %217 = vector.load %arg3[%c0_78, %c0_79, %c0_80] : memref<1x8x32xf32, #tpu.memory_space<vmem>>, vector<1x8x32xf32>
    %218 = vector.shape_cast %217 : vector<1x8x32xf32> to vector<8x32xf32>
    %219 = vector.shape_cast %216 : vector<8x32xf32> to vector<1x8x32xf32>
    tpu.vector_store %arg3[%c0_78, %c0_79, %c0_80], %219 {strides = array<i32>} : memref<1x8x32xf32, #tpu.memory_space<vmem>>, vector<1x8x32xf32>,
    return
  }
  func.func @transform_0(%arg0: i32) -> (i32, i32, i32) {
    %c0_i32 = arith.constant 0 : i32
    %c0_i32_0 = arith.constant 0 : i32
    %c0_i32_1 = arith.constant 0 : i32
    return %arg0, %c0_i32, %c0_i32_0 : i32, i32, i32
  }
  func.func @transform_1(%arg0: i32) -> (i32, i32) {
    %c0_i32 = arith.constant 0 : i32
    %c0_i32_0 = arith.constant 0 : i32
    %c0_i32_1 = arith.constant 0 : i32
    return %c0_i32, %c0_i32_0 : i32, i32
  }
  func.func @transform_2(%arg0: i32) -> (i32, i32, i32) {
    %c0_i32 = arith.constant 0 : i32
    %c0_i32_0 = arith.constant 0 : i32
    %c0_i32_1 = arith.constant 0 : i32
    return %arg0, %c0_i32, %c0_i32_0 : i32, i32, i32
  }
}

</mosaic_0001>

<llo_original>
// kernel: liquid_nn_forward.1
$region0: #{liquid_nn_forward.1}
  #allocation0 [shape = 'u32[]', space=smem, size = 0x4, offset = 0x4, fixed_abs, tag = 'smem constant byte address 0x4 - core index']
  #allocation1 [shape = 'u32[144,128]{1,0:T(1,128)}', space=vmem, size = 0x12000, scoped, tag = 'internal scratch']
  %s0 = inlined_call_operand.vmem [shape: f32[4,8,16], index: 0, kind: input, shape index: {}]
  %s1 = inlined_call_operand.vmem [shape: f32[480,32], index: 1, kind: input, shape index: {}]
  %s2 = inlined_call_operand.hbm [shape: f32[4,8,32], index: 2, kind: output, shape index: {}]
  %s3 = sld [smem:[#allocation0]]
  $region41: #{liquid_nn_forward.1} parent=0
    _
  %s5 = ssub.s32 1, %s3
  %s6 = scalar_select 0, %s5, %s3
  $region1: #{liquid_nn_forward.1} parent=0
    #allocation2 [shape = 'u8[8192]{0}', space=vmem, size = 0x2000, scoped, tag = 'output window, operand 0']
    #allocation3 [shape = 's32[2]{0}', space=sflag, size = 0x8, scoped, tag = 'scoped memory for liquid_nn_forward.1']
    %7 = vsyncpa [#allocation3], 0
    %s8 = scalar_lea.sflag [#allocation3], 1
    %9 = vsyncpa %s8, 0
    loop: start=0, step=1, limit=6
    $region2: #{liquid_nn_forward.1} parent=1 // loop_pre_header
      _
    $region3: #{liquid_nn_forward.1} parent=1 // loop_header
      %s11 = sphi 0, %s15
      %p12 = scmp.ge.s32.totalorder %s11, 6
      %s21 = sphi 0, %s23
      %s24 = sphi 0, %s21
      %s25 = sphi 0, %s24
      %s41 = sphi 0, %s25
      %s45 = sphi 0, %s45
      %s47 = sphi 0, %s45
      %s48 = sphi 0, %s47
      %s62 = sphi 0, %s48
      %s68 = sphi 0, %s70
      %s71 = sphi 0, %s68
      %s72 = sphi 0, %s71
      %s88 = sphi 0, %s72
    $region4: #{liquid_nn_forward.1} parent=1 // loop_header_branch
      %14 = sbr.rel (%p12) target = $region8
    $region5: #{liquid_nn_forward.1} parent=1 // loop_body
      %s16 = ssub.s32 %s11, 1
      %s17 = ssub.s32 %s11, 2
      %s18 = sadd.s32 %s11, 1
      %s19 = ssub.s32 %s11, %s18
      %p20 = scmp.eq.s32.totalorder %s19, 0
      %s22 = sadd.s32 %s21, 1
      %s23 = scalar_select %p20, %s21, %s22
      %p26 = pneg %p20
      %p27 = scmp.eq.s32.totalorder %s11, 3
      %p28 = por %p26, %p27
      %p29 = scmp.ne.s32.totalorder %s21, %s24
      %p30 = scmp.eq.s32.totalorder %s11, 0
      %p31 = por %p29, %p30
      %p32 = scmp.ne.s32.totalorder %s21, %s24
      %p33 = scmp.eq.s32.totalorder %s16, 3
      %p34 = por %p32, %p33
      %p35 = scmp.ne.s32.totalorder %s24, %s25
      %p36 = scmp.eq.s32.totalorder %s16, 0
      %p37 = por %p35, %p36
      %p38 = scmp.ne.s32.totalorder %s24, %s25
      %p39 = scmp.eq.s32.totalorder %s17, 3
      %p40 = por %p38, %p39
      %p42 = scmp.ne.s32.totalorder %s25, %s41
      %p43 = scmp.eq.s32.totalorder %s17, 0
      %p44 = por %p42, %p43
      %s46 = sadd.s32 %s45, 1
      %p49 = scmp.eq.s32.totalorder %s11, 3
      %p50 = scmp.ne.s32.totalorder %s45, %s47
      %p51 = scmp.eq.s32.totalorder %s11, 0
      %p52 = por %p50, %p51
      %p53 = scmp.ne.s32.totalorder %s45, %s47
      %p54 = scmp.eq.s32.totalorder %s16, 3
      %p55 = por %p53, %p54
      %p56 = scmp.ne.s32.totalorder %s47, %s48
      %p57 = scmp.eq.s32.totalorder %s16, 0
      %p58 = por %p56, %p57
      %p59 = scmp.ne.s32.totalorder %s47, %s48
      %p60 = scmp.eq.s32.totalorder %s17, 3
      %p61 = por %p59, %p60
      %p63 = scmp.ne.s32.totalorder %s48, %s62
      %p64 = scmp.eq.s32.totalorder %s17, 0
      %p65 = por %p63, %p64
      %s66 = ssub.s32 %s11, %s18
      %p67 = scmp.eq.s32.totalorder %s66, 0
      %s69 = sadd.s32 %s68, 1
      %s70 = scalar_select %p67, %s68, %s69
      %p73 = pneg %p67
      %p74 = scmp.eq.s32.totalorder %s11, 3
      %p75 = por %p73, %p74
      %p76 = scmp.ne.s32.totalorder %s68, %s71
      %p77 = scmp.eq.s32.totalorder %s11, 0
      %p78 = por %p76, %p77
      %p79 = scmp.ne.s32.totalorder %s68, %s71
      %p80 = scmp.eq.s32.totalorder %s16, 3
      %p81 = por %p79, %p80
      %p82 = scmp.ne.s32.totalorder %s71, %s72
      %p83 = scmp.eq.s32.totalorder %s16, 0
      %p84 = por %p82, %p83
      %p85 = scmp.ne.s32.totalorder %s71, %s72
      %p86 = scmp.eq.s32.totalorder %s17, 3
      %p87 = por %p85, %p86
      %p89 = scmp.ne.s32.totalorder %s72, %s88
      %p90 = scmp.eq.s32.totalorder %s17, 0
      %p91 = por %p89, %p90
      %p92 = scmp.le.s32.totalorder 1, %s11
      %p93 = scmp.lt.s32.totalorder %s11, 5
      %p94 = pnand %p92, %p93
      %p95 = pneg %p94
      // Predicated region
      $region9: #{liquid_nn_forward.1} parent=5 // pred_check
        _
      $region10: #{liquid_nn_forward.1} parent=5 // pred_check_branch
        %97 = sbr.rel (%p94) target = $region12
      $region11: #{liquid_nn_forward.1} parent=5 // pred_region
        %s98 = ssub.s32 %s11, 1
        // Predicated region
        $region13: #{liquid_nn_forward.1} parent=11 // pred_check
          %p99 = pneg %p58
        $region14: #{liquid_nn_forward.1} parent=11 // pred_check_branch
          %101 = sbr.rel (%p99) target = $region16
        $region15: #{liquid_nn_forward.1} parent=11 // pred_region
          _
        $region16: #{liquid_nn_forward.1} parent=11 // pred_fallthru
          _
      $region12: #{liquid_nn_forward.1} parent=5 // pred_fallthru
        _
      %p102 = scmp.lt.s32.totalorder %s11, 4
      // Predicated region
      $region17: #{liquid_nn_forward.1} parent=5 // pred_check
        %p103 = pneg %p102
      $region18: #{liquid_nn_forward.1} parent=5 // pred_check_branch
        %105 = sbr.rel (%p103) target = $region20
      $region19: #{liquid_nn_forward.1} parent=5 // pred_region
        // Predicated region
        $region21: #{liquid_nn_forward.1} parent=19 // pred_check
          %p106 = pneg %p31
        $region22: #{liquid_nn_forward.1} parent=19 // pred_check_branch
          %108 = sbr.rel (%p106) target = $region24
        $region23: #{liquid_nn_forward.1} parent=19 // pred_region
          %p109 = scmp.lt.s32.totalorder %s11, 3
          %s110 = scalar_select %p109, %s11, 3
          %s111 = smul.addr %s110, 8
          %s112 = scalar_lea.vmem %s0, %s111
        $region24: #{liquid_nn_forward.1} parent=19 // pred_fallthru
          _
      $region20: #{liquid_nn_forward.1} parent=5 // pred_fallthru
        _
      %p113 = scmp.le.s32.totalorder 1, %s11
      %p114 = scmp.lt.s32.totalorder %s11, 5
      %p115 = pnand %p113, %p114
      %p116 = pneg %p115
      // Predicated region
      $region25: #{liquid_nn_forward.1} parent=5 // pred_check
        _
      $region26: #{liquid_nn_forward.1} parent=5 // pred_check_branch
        %118 = sbr.rel (%p115) target = $region28
      $region27: #{liquid_nn_forward.1} parent=5 // pred_region
        %s119 = ssub.s32 %s11, 1
        %p120 = scmp.lt.s32.totalorder %s16, 3
        %s121 = scalar_select %p120, %s16, 3
        %s122 = smul.addr %s121, 8
        %s123 = scalar_lea.vmem %s0, %s122
        %p124 = pneg %p37
        %p125 = pneg %p34
        %p126 = pneg %p58
        %p127 = pneg %p55
        %p128 = pneg %p84
        %p129 = pneg %p81
        %s130 = sand.u32 %s71, 1
        %s131 = scalar_lea.sflag [#allocation3], %s130
        %s132 = sand.u32 %s71, 1
        %s133 = smul.addr %s132, 8
        %s134 = scalar_lea.vmem [#allocation2], %s133
        %p135 = scmp.lt.s32.totalorder %s16, 3
        %s136 = scalar_select %p135, %s16, 3
        %s137 = smul.addr %s136, 8
        %s138 = scalar_lea.vmem %s0, %s137
        %v140 = vld [vmem:[%s138] sm:$0xff]
        %v141 = vld [vmem:[%s1] sm:$0xff]
        %v142 = vld [vmem:[%s1 + $0x8] sm:$0xff]
        %v143 = vld [vmem:[%s1 + $0xd0] sm:$0xff]
        %v144 = vld [vmem:[%s1 + $0xd8] sm:$0xff]
        %v145 = vld [vmem:[%s1 + $0xe0] sm:$0xff]
        %v146 = vld [vmem:[%s1 + $0xe8] sm:$0xff]
        %v147 = vld [vmem:[%s1 + $0xf0] sm:$0xff]
        %v148 = vld [vmem:[%s1 + $0xf8] sm:$0xff]
        %v149 = vld [vmem:[%s1 + $0x100] sm:$0xff]
        %v150 = vld [vmem:[%s1 + $0x108] sm:$0xff]
        %v151 = vld [vmem:[%s1 + $0x110] sm:$0xff]
        %v152 = vld [vmem:[%s1 + $0x118] sm:$0xff]
        %v153 = vld [vmem:[%s1 + $0x120] sm:$0xff]
        %v154 = vld [vmem:[%s1 + $0x128] sm:$0xff]
        %v155 = vld [vmem:[%s1 + $0x130] sm:$0xff]
        %v156 = vld [vmem:[%s1 + $0x138] sm:$0xff]
        %v157 = vld [vmem:[%s1 + $0x140] sm:$0xff]
        %v158 = vld [vmem:[%s1 + $0x148] sm:$0xff]
        %vm159 = vcmask 130048
        %v161 = vsel %vm159, %v140, 0
        %163 = vmatprep.subr.mxu0 0.0
        %164 = vmatpush1.msra.mxu0 %v141
        %165 = vmatprep.subr.mxu0 0.0
        %166 = vmatpush1.msra.mxu0 %v142
        %167 = vmatprep.subr.mxu0 0.0
        %168 = vmatpush1.msra.mxu0 0.0
        %169 = vmatprep.subr.mxu0 0.0
        %170 = vmatpush1.msra.mxu0 0.0
        %171 = vmatprep.subr.mxu0 0.0
        %172 = vmatpush1.msra.mxu0 0.0
        %173 = vmatprep.subr.mxu0 0.0
        %174 = vmatpush1.msra.mxu0 0.0
        %175 = vmatprep.subr.mxu0 0.0
        %176 = vmatpush1.msra.mxu0 0.0
        %177 = vmatprep.subr.mxu0 0.0
        %178 = vmatpush1.msra.mxu0 0.0
        %179 = vmatprep.subr.mxu0 0.0
        %180 = vmatpush1.msra.mxu0 0.0
        %181 = vmatprep.subr.mxu0 0.0
        %182 = vmatpush1.msra.mxu0 0.0
        %183 = vmatprep.subr.mxu0 0.0
        %184 = vmatpush1.msra.mxu0 0.0
        %185 = vmatprep.subr.mxu0 0.0
        %186 = vmatpush1.msra.mxu0 0.0
        %187 = vmatprep.subr.mxu0 0.0
        %188 = vmatpush1.msra.mxu0 0.0
        %189 = vmatprep.subr.mxu0 0.0
        %190 = vmatpush1.msra.mxu0 0.0
        %191 = vmatprep.subr.mxu0 0.0
        %192 = vmatpush1.msra.mxu0 0.0
        %193 = vmatprep.subr.mxu0 0.0
        %194 = vmatpush1.msra.mxu0 0.0
        %195 = vmatprep.subr.mxu0 0.0
        %196 = vmatpush1.msra.mxu0 0.0
        %197 = vmatprep.subr.mxu0 0.0
        %198 = vmatpush1.msra.mxu0 0.0
        %199 = vmatprep.subr.mxu0 0.0
        %200 = vmatpush1.msra.mxu0 0.0
        %201 = vmatprep.subr.mxu0 0.0
        %202 = vmatpush1.msra.mxu0 0.0
        %203 = vmatprep.subr.mxu0 0.0
        %204 = vmatpush1.msra.mxu0 0.0
        %205 = vmatprep.subr.mxu0 0.0
        %206 = vmatpush1.msra.mxu0 0.0
        %207 = vmatprep.subr.mxu0 0.0
        %208 = vmatpush1.msra.mxu0 0.0
        %209 = vmatprep.subr.mxu0 0.0
        %210 = vmatpush1.msra.mxu0 0.0
        %211 = vmatprep.subr.mxu0 0.0
        %212 = vmatpush1.msra.mxu0 0.0
        %213 = vmatprep.subr.mxu0 0.0
        %214 = vmatpush1.msra.mxu0 0.0
        %215 = vmatprep.subr.mxu0 0.0
        %216 = vmatpush1.msra.mxu0 0.0
        %217 = vmatprep.subr.mxu0 0.0
        %218 = vmatpush1.msra.mxu0 0.0
        %219 = vmatprep.subr.mxu0 0.0
        %220 = vmatpush1.msra.mxu0 0.0
        %221 = vmatprep.subr.mxu0 0.0
        %222 = vmatpush1.msra.mxu0 0.0
        %223 = vmatprep.subr.mxu0 0.0
        %224 = vmatpush1.msra.mxu0 0.0
        %225 = vmatprep.subr.mxu0 0.0
        %226 = vmatpush1.msra.mxu0 0.0
        %227 = vmatprep.mubr.f32.mxu0 0.0
        %228 = vmatmul.mubr.f32.gmra.mrb[0].mxu0 %v161
        %v229 = vpop.f32.mrb[0].mxu0
        %v230 = vadd.f32 %v155, %v229
        %v231 = vpop.f32.mrb[0].mxu0
        %232 = vdwg.mxu0
        %v233 = vmax.f32 %v230, 0.0
        %vm234 = vcmask 261120
        %v236 = vsel %vm234, %v233, 0
        %238 = vmatprep.subr.mxu0 0.0
        %239 = vmatpush1.msra.mxu0 %v143
        %240 = vmatprep.subr.mxu0 0.0
        %241 = vmatpush1.msra.mxu0 %v144
        %242 = vmatprep.subr.mxu0 0.0
        %243 = vmatpush1.msra.mxu0 %v145
        %244 = vmatprep.subr.mxu0 0.0
        %245 = vmatpush1.msra.mxu0 %v146
        %246 = vmatprep.subr.mxu0 0.0
        %247 = vmatpush1.msra.mxu0 0.0
        %248 = vmatprep.subr.mxu0 0.0
        %249 = vmatpush1.msra.mxu0 0.0
        %250 = vmatprep.subr.mxu0 0.0
        %251 = vmatpush1.msra.mxu0 0.0
        %252 = vmatprep.subr.mxu0 0.0
        %253 = vmatpush1.msra.mxu0 0.0
        %254 = vmatprep.subr.mxu0 0.0
        %255 = vmatpush1.msra.mxu0 0.0
        %256 = vmatprep.subr.mxu0 0.0
        %257 = vmatpush1.msra.mxu0 0.0
        %258 = vmatprep.subr.mxu0 0.0
        %259 = vmatpush1.msra.mxu0 0.0
        %260 = vmatprep.subr.mxu0 0.0
        %261 = vmatpush1.msra.mxu0 0.0
        %262 = vmatprep.subr.mxu0 0.0
        %263 = vmatpush1.msra.mxu0 0.0
        %264 = vmatprep.subr.mxu0 0.0
        %265 = vmatpush1.msra.mxu0 0.0
        %266 = vmatprep.subr.mxu0 0.0
        %267 = vmatpush1.msra.mxu0 0.0
        %268 = vmatprep.subr.mxu0 0.0
        %269 = vmatpush1.msra.mxu0 0.0
        %270 = vmatprep.subr.mxu0 0.0
        %271 = vmatpush1.msra.mxu0 0.0
        %272 = vmatprep.subr.mxu0 0.0
        %273 = vmatpush1.msra.mxu0 0.0
        %274 = vmatprep.subr.mxu0 0.0
        %275 = vmatpush1.msra.mxu0 0.0
        %276 = vmatprep.subr.mxu0 0.0
        %277 = vmatpush1.msra.mxu0 0.0
        %278 = vmatprep.subr.mxu0 0.0
        %279 = vmatpush1.msra.mxu0 0.0
        %280 = vmatprep.subr.mxu0 0.0
        %281 = vmatpush1.msra.mxu0 0.0
        %282 = vmatprep.subr.mxu0 0.0
        %283 = vmatpush1.msra.mxu0 0.0
        %284 = vmatprep.subr.mxu0 0.0
        %285 = vmatpush1.msra.mxu0 0.0
        %286 = vmatprep.subr.mxu0 0.0
        %287 = vmatpush1.msra.mxu0 0.0
        %288 = vmatprep.subr.mxu0 0.0
        %289 = vmatpush1.msra.mxu0 0.0
        %290 = vmatprep.subr.mxu0 0.0
        %291 = vmatpush1.msra.mxu0 0.0
        %292 = vmatprep.subr.mxu0 0.0
        %293 = vmatpush1.msra.mxu0 0.0
        %294 = vmatprep.subr.mxu0 0.0
        %295 = vmatpush1.msra.mxu0 0.0
        %296 = vmatprep.subr.mxu0 0.0
        %297 = vmatpush1.msra.mxu0 0.0
        %298 = vmatprep.subr.mxu0 0.0
        %299 = vmatpush1.msra.mxu0 0.0
        %300 = vmatprep.subr.mxu0 0.0
        %301 = vmatpush1.msra.mxu0 0.0
        %302 = vmatprep.mubr.f32.mxu0 0.0
        %303 = vmatmul.mubr.f32.gmra.mrb[0].mxu0 %v236
        %v304 = vpop.f32.mrb[0].mxu0
        %v305 = vadd.f32 %v156, %v304
        %v306 = vpop.f32.mrb[0].mxu0
        %307 = vdwg.mxu0
        %v308 = vmax.f32 %v305, 0.0
        %v310 = vsel %vm234, %v308, 0
        %312 = vmatprep.subr.mxu0 0.0
        %313 = vmatpush1.msra.mxu0 %v147
        %314 = vmatprep.subr.mxu0 0.0
        %315 = vmatpush1.msra.mxu0 %v148
        %316 = vmatprep.subr.mxu0 0.0
        %317 = vmatpush1.msra.mxu0 %v149
        %318 = vmatprep.subr.mxu0 0.0
        %319 = vmatpush1.msra.mxu0 %v150
        %320 = vmatprep.subr.mxu0 0.0
        %321 = vmatpush1.msra.mxu0 0.0
        %322 = vmatprep.subr.mxu0 0.0
        %323 = vmatpush1.msra.mxu0 0.0
        %324 = vmatprep.subr.mxu0 0.0
        %325 = vmatpush1.msra.mxu0 0.0
        %326 = vmatprep.subr.mxu0 0.0
        %327 = vmatpush1.msra.mxu0 0.0
        %328 = vmatprep.subr.mxu0 0.0
        %329 = vmatpush1.msra.mxu0 0.0
        %330 = vmatprep.subr.mxu0 0.0
        %331 = vmatpush1.msra.mxu0 0.0
        %332 = vmatprep.subr.mxu0 0.0
        %333 = vmatpush1.msra.mxu0 0.0
        %334 = vmatprep.subr.mxu0 0.0
        %335 = vmatpush1.msra.mxu0 0.0
        %336 = vmatprep.subr.mxu0 0.0
        %337 = vmatpush1.msra.mxu0 0.0
        %338 = vmatprep.subr.mxu0 0.0
        %339 = vmatpush1.msra.mxu0 0.0
        %340 = vmatprep.subr.mxu0 0.0
        %341 = vmatpush1.msra.mxu0 0.0
        %342 = vmatprep.subr.mxu0 0.0
        %343 = vmatpush1.msra.mxu0 0.0
        %344 = vmatprep.subr.mxu0 0.0
        %345 = vmatpush1.msra.mxu0 0.0
        %346 = vmatprep.subr.mxu0 0.0
        %347 = vmatpush1.msra.mxu0 0.0
        %348 = vmatprep.subr.mxu0 0.0
        %349 = vmatpush1.msra.mxu0 0.0
        %350 = vmatprep.subr.mxu0 0.0
        %351 = vmatpush1.msra.mxu0 0.0
        %352 = vmatprep.subr.mxu0 0.0
        %353 = vmatpush1.msra.mxu0 0.0
        %354 = vmatprep.subr.mxu0 0.0
        %355 = vmatpush1.msra.mxu0 0.0
        %356 = vmatprep.subr.mxu0 0.0
        %357 = vmatpush1.msra.mxu0 0.0
        %358 = vmatprep.subr.mxu0 0.0
        %359 = vmatpush1.msra.mxu0 0.0
        %360 = vmatprep.subr.mxu0 0.0
        %361 = vmatpush1.msra.mxu0 0.0
        %362 = vmatprep.subr.mxu0 0.0
        %363 = vmatpush1.msra.mxu0 0.0
        %364 = vmatprep.subr.mxu0 0.0
        %365 = vmatpush1.msra.mxu0 0.0
        %366 = vmatprep.subr.mxu0 0.0
        %367 = vmatpush1.msra.mxu0 0.0
        %368 = vmatprep.subr.mxu0 0.0
        %369 = vmatpush1.msra.mxu0 0.0
        %370 = vmatprep.subr.mxu0 0.0
        %371 = vmatpush1.msra.mxu0 0.0
        %372 = vmatprep.subr.mxu0 0.0
        %373 = vmatpush1.msra.mxu0 0.0
        %374 = vmatprep.subr.mxu0 0.0
        %375 = vmatpush1.msra.mxu0 0.0
        %376 = vmatprep.mubr.f32.mxu0 0.0
        %377 = vmatmul.mubr.f32.gmra.mrb[0].mxu0 %v310
        %v378 = vpop.f32.mrb[0].mxu0
        %v379 = vadd.f32 %v157, %v378
        %v380 = vpop.f32.mrb[0].mxu0
        %381 = vdwg.mxu0
        %v382 = vsel %vm234, %v379, -inf
        %383 = vmax.xlane.f32.xlu0 %v382
        %v384 = vpop.xlane.xlu0 %383
        %vm385 = vcmp.gt.f32.partialorder %v384, 0.0
        %v386 = vld [vmem:[%s1 + $0x10] sm:$0xff]
        %v387 = vld [vmem:[%s1 + $0x18] sm:$0xff]
        %v388 = vld [vmem:[%s1 + $0x20] sm:$0xff]
        %v389 = vld [vmem:[%s1 + $0x28] sm:$0xff]
        %v390 = vld [vmem:[%s1 + $0x150] sm:$0xff]
        %v391 = vld [vmem:[%s1 + $0x180] sm:$0xff]
        %v392 = vld [vmem:[%s1 + $0x1b0] sm:$0xff]
        %v393 = vpack.c.bf16 %v233, %v233
        %v394 = vpack.c.bf16 %v387, %v386
        %v395 = vpack.c.bf16 %v389, %v388
        %v397 = vsel %vm234, %v393, 0
        %399 = vmatprep.subr.bf16.mxu0 0
        %400 = vmatpush1.bf16.msra.mxu0 %v394
        %401 = vmatprep.subr.bf16.mxu0 0
        %402 = vmatpush1.bf16.msra.mxu0 %v395
        %403 = vmatprep.subr.bf16.mxu0 0
        %404 = vmatpush1.bf16.msra.mxu0 0
        %405 = vmatprep.subr.bf16.mxu0 0
        %406 = vmatpush1.bf16.msra.mxu0 0
        %407 = vmatprep.subr.bf16.mxu0 0
        %408 = vmatpush1.bf16.msra.mxu0 0
        %409 = vmatprep.subr.bf16.mxu0 0
        %410 = vmatpush1.bf16.msra.mxu0 0
        %411 = vmatprep.subr.bf16.mxu0 0
        %412 = vmatpush1.bf16.msra.mxu0 0
        %413 = vmatprep.subr.bf16.mxu0 0
        %414 = vmatpush1.bf16.msra.mxu0 0
        %415 = vmatprep.subr.bf16.mxu0 0
        %416 = vmatpush1.bf16.msra.mxu0 0
        %417 = vmatprep.subr.bf16.mxu0 0
        %418 = vmatpush1.bf16.msra.mxu0 0
        %419 = vmatprep.subr.bf16.mxu0 0
        %420 = vmatpush1.bf16.msra.mxu0 0
        %421 = vmatprep.subr.bf16.mxu0 0
        %422 = vmatpush1.bf16.msra.mxu0 0
        %423 = vmatprep.subr.bf16.mxu0 0
        %424 = vmatpush1.bf16.msra.mxu0 0
        %425 = vmatprep.subr.bf16.mxu0 0
        %426 = vmatpush1.bf16.msra.mxu0 0
        %427 = vmatprep.subr.bf16.mxu0 0
        %428 = vmatpush1.bf16.msra.mxu0 0
        %429 = vmatprep.subr.bf16.mxu0 0
        %430 = vmatpush1.bf16.msra.mxu0 0
        %431 = vmatprep.mubr.bf16.mxu0 0
        %432 = vmatmul.mubr.bf16.gmra.mrb[0].mxu0 %v397
        %v433 = vpop.f32.mrb[0].mxu0
        %v434 = vadd.f32 %v390, %v433
        %v435 = vpop.f32.mrb[0].mxu0
        %v436 = vpop.f32.mrb[0].mxu0
        %v437 = vpop.f32.mrb[0].mxu0
        %438 = vdwg.mxu0
        %v439 = vtanh.pop %v434
        %v440 = vsel %vm234, %v439, 0.0
        %441 = vadd.xlane.f32.xlu0 %v440
        %v442 = vpop.xlane.xlu0 %441
        %v443 = vrcp.pop 32.0
        %v444 = vmul.f32 %v442, %v443
        %v445 = vmul.f32 %v439, %v439
        %v446 = vsel %vm234, %v445, 0.0
        %447 = vadd.xlane.f32.xlu0 %v446
        %v448 = vpop.xlane.xlu0 %447
        %v449 = vmul.f32 %v448, %v443
        %v450 = vmul.f32 %v444, %v444
        %v451 = vsub.f32 %v449, %v450
        %v452 = vadd.f32 %v451, 1.4133077e-06
        %v453 = vrsqrt.pop %v452
        %v454 = vmul.f32 %v453, %v391
        %v455 = vsub.f32 %v439, %v444
        %v456 = vmul.f32 %v455, %v454
        %v457 = vadd.f32 %v456, %v392
        %v458 = vld [vmem:[%s1 + $0x30] sm:$0xff]
        %v459 = vld [vmem:[%s1 + $0x38] sm:$0xff]
        %v460 = vld [vmem:[%s1 + $0x40] sm:$0xff]
        %v461 = vld [vmem:[%s1 + $0x48] sm:$0xff]
        %v462 = vld [vmem:[%s1 + $0x158] sm:$0xff]
        %v463 = vld [vmem:[%s1 + $0x188] sm:$0xff]
        %v464 = vld [vmem:[%s1 + $0x1b8] sm:$0xff]
        %v465 = vpack.c.bf16 %v457, %v457
        %v466 = vpack.c.bf16 %v459, %v458
        %v467 = vpack.c.bf16 %v461, %v460
        %v469 = vsel %vm234, %v465, 0
        %471 = vmatprep.subr.bf16.mxu0 0
        %472 = vmatpush1.bf16.msra.mxu0 %v466
        %473 = vmatprep.subr.bf16.mxu0 0
        %474 = vmatpush1.bf16.msra.mxu0 %v467
        %475 = vmatprep.subr.bf16.mxu0 0
        %476 = vmatpush1.bf16.msra.mxu0 0
        %477 = vmatprep.subr.bf16.mxu0 0
        %478 = vmatpush1.bf16.msra.mxu0 0
        %479 = vmatprep.subr.bf16.mxu0 0
        %480 = vmatpush1.bf16.msra.mxu0 0
        %481 = vmatprep.subr.bf16.mxu0 0
        %482 = vmatpush1.bf16.msra.mxu0 0
        %483 = vmatprep.subr.bf16.mxu0 0
        %484 = vmatpush1.bf16.msra.mxu0 0
        %485 = vmatprep.subr.bf16.mxu0 0
        %486 = vmatpush1.bf16.msra.mxu0 0
        %487 = vmatprep.subr.bf16.mxu0 0
        %488 = vmatpush1.bf16.msra.mxu0 0
        %489 = vmatprep.subr.bf16.mxu0 0
        %490 = vmatpush1.bf16.msra.mxu0 0
        %491 = vmatprep.subr.bf16.mxu0 0
        %492 = vmatpush1.bf16.msra.mxu0 0
        %493 = vmatprep.subr.bf16.mxu0 0
        %494 = vmatpush1.bf16.msra.mxu0 0
        %495 = vmatprep.subr.bf16.mxu0 0
        %496 = vmatpush1.bf16.msra.mxu0 0
        %497 = vmatprep.subr.bf16.mxu0 0
        %498 = vmatpush1.bf16.msra.mxu0 0
        %499 = vmatprep.subr.bf16.mxu0 0
        %500 = vmatpush1.bf16.msra.mxu0 0
        %501 = vmatprep.subr.bf16.mxu0 0
        %502 = vmatpush1.bf16.msra.mxu0 0
        %503 = vmatprep.mubr.bf16.mxu0 0
        %504 = vmatmul.mubr.bf16.gmra.mrb[0].mxu0 %v469
        %v505 = vpop.f32.mrb[0].mxu0
        %v506 = vadd.f32 %v462, %v505
        %v507 = vpop.f32.mrb[0].mxu0
        %v508 = vpop.f32.mrb[0].mxu0
        %v509 = vpop.f32.mrb[0].mxu0
        %510 = vdwg.mxu0
        %v511 = vtanh.pop %v506
        %v512 = vsel %vm234, %v511, 0.0
        %513 = vadd.xlane.f32.xlu0 %v512
        %v514 = vpop.xlane.xlu0 %513
        %v515 = vmul.f32 %v514, %v443
        %v516 = vmul.f32 %v511, %v511
        %v517 = vsel %vm234, %v516, 0.0
        %518 = vadd.xlane.f32.xlu0 %v517
        %v519 = vpop.xlane.xlu0 %518
        %v520 = vmul.f32 %v519, %v443
        %v521 = vmul.f32 %v515, %v515
        %v522 = vsub.f32 %v520, %v521
        %v523 = vadd.f32 %v522, 1.4133077e-06
        %v524 = vrsqrt.pop %v523
        %v525 = vmul.f32 %v524, %v463
        %v526 = vsub.f32 %v511, %v515
        %v527 = vmul.f32 %v526, %v525
        %v528 = vadd.f32 %v527, %v464
        %v529 = vadd.f32 %v528, %v233
        %v530 = vsel %vm385, 1, 0
        %vm531 = vcmp.eq.s32.totalorder %v530, 1
        %v533 = vrot.slane %v529, 1
        %v534 = vrot.slane %v529, 2
        %v535 = vrot.slane %v529, 3
        %v536 = vrot.slane %v529, 4
        %v537 = vrot.slane %v529, 5
        %v538 = vrot.slane %v529, 6
        %v539 = vrot.slane %v529, 7
        %v548 = vrot.slane %v233, 1
        %v549 = vrot.slane %v233, 2
        %v550 = vrot.slane %v233, 3
        %v551 = vrot.slane %v233, 4
        %v552 = vrot.slane %v233, 5
        %v553 = vrot.slane %v233, 6
        %v554 = vrot.slane %v233, 7
        %v563 = vsel %vm531, %v529, %v233
        %v564 = vsel %vm531, %v533, %v548
        %v565 = vsel %vm531, %v534, %v549
        %v566 = vsel %vm531, %v535, %v550
        %v567 = vsel %vm531, %v536, %v551
        %v568 = vsel %vm531, %v537, %v552
        %v569 = vsel %vm531, %v538, %v553
        %v570 = vsel %vm531, %v539, %v554
        %v571 = vld [vmem:[%s1 + $0x50] sm:$0xff]
        %v572 = vld [vmem:[%s1 + $0x58] sm:$0xff]
        %v573 = vld [vmem:[%s1 + $0x60] sm:$0xff]
        %v574 = vld [vmem:[%s1 + $0x68] sm:$0xff]
        %v575 = vld [vmem:[%s1 + $0x160] sm:$0xff]
        %v576 = vld [vmem:[%s1 + $0x190] sm:$0xff]
        %v577 = vld [vmem:[%s1 + $0x1c0] sm:$0xff]
        %v578 = vpack.c.bf16 %v563, %v563
        %v579 = vpack.c.bf16 %v564, %v564
        %v580 = vpack.c.bf16 %v565, %v565
        %v581 = vpack.c.bf16 %v566, %v566
        %v582 = vpack.c.bf16 %v567, %v567
        %v583 = vpack.c.bf16 %v568, %v568
        %v584 = vpack.c.bf16 %v569, %v569
        %v585 = vpack.c.bf16 %v570, %v570
        %v586 = vpack.c.bf16 %v572, %v571
        %v587 = vpack.c.bf16 %v574, %v573
        %v596 = vunpack.c.l.b16 %v578
        %v597 = vunpack.c.l.b16 %v579
        %v598 = vunpack.c.l.b16 %v580
        %v599 = vunpack.c.l.b16 %v581
        %v600 = vunpack.c.l.b16 %v582
        %v601 = vunpack.c.l.b16 %v583
        %v602 = vunpack.c.l.b16 %v584
        %v603 = vunpack.c.l.b16 %v585
        %v604 = vrot.slane %v597, 7
        %vm605 = vcmask 1041409
        %v606 = vsel %vm605, %v604, %v596
        %v607 = vrot.slane %v598, 6
        %vm608 = vcmask 1042434
        %v609 = vsel %vm608, %v607, %v606
        %v610 = vrot.slane %v599, 5
        %vm611 = vcmask 1043459
        %v612 = vsel %vm611, %v610, %v609
        %v613 = vrot.slane %v600, 4
        %vm614 = vcmask 1044484
        %v615 = vsel %vm614, %v613, %v612
        %v616 = vrot.slane %v601, 3
        %vm617 = vcmask 1045509
        %v618 = vsel %vm617, %v616, %v615
        %v619 = vrot.slane %v602, 2
        %vm620 = vcmask 1046534
        %v621 = vsel %vm620, %v619, %v618
        %v622 = vrot.slane %v603, 1
        %vm623 = vcmask 1047559
        %v624 = vsel %vm623, %v622, %v621
        %v625 = vpack.c.b16 %v624, %v624
        %v627 = vsel %vm234, %v625, 0
        %629 = vmatprep.subr.bf16.mxu0 0
        %630 = vmatpush1.bf16.msra.mxu0 %v586
        %631 = vmatprep.subr.bf16.mxu0 0
        %632 = vmatpush1.bf16.msra.mxu0 %v587
        %633 = vmatprep.subr.bf16.mxu0 0
        %634 = vmatpush1.bf16.msra.mxu0 0
        %635 = vmatprep.subr.bf16.mxu0 0
        %636 = vmatpush1.bf16.msra.mxu0 0
        %637 = vmatprep.subr.bf16.mxu0 0
        %638 = vmatpush1.bf16.msra.mxu0 0
        %639 = vmatprep.subr.bf16.mxu0 0
        %640 = vmatpush1.bf16.msra.mxu0 0
        %641 = vmatprep.subr.bf16.mxu0 0
        %642 = vmatpush1.bf16.msra.mxu0 0
        %643 = vmatprep.subr.bf16.mxu0 0
        %644 = vmatpush1.bf16.msra.mxu0 0
        %645 = vmatprep.subr.bf16.mxu0 0
        %646 = vmatpush1.bf16.msra.mxu0 0
        %647 = vmatprep.subr.bf16.mxu0 0
        %648 = vmatpush1.bf16.msra.mxu0 0
        %649 = vmatprep.subr.bf16.mxu0 0
        %650 = vmatpush1.bf16.msra.mxu0 0
        %651 = vmatprep.subr.bf16.mxu0 0
        %652 = vmatpush1.bf16.msra.mxu0 0
        %653 = vmatprep.subr.bf16.mxu0 0
        %654 = vmatpush1.bf16.msra.mxu0 0
        %655 = vmatprep.subr.bf16.mxu0 0
        %656 = vmatpush1.bf16.msra.mxu0 0
        %657 = vmatprep.subr.bf16.mxu0 0
        %658 = vmatpush1.bf16.msra.mxu0 0
        %659 = vmatprep.subr.bf16.mxu0 0
        %660 = vmatpush1.bf16.msra.mxu0 0
        %661 = vmatprep.mubr.bf16.mxu0 0
        %662 = vmatmul.mubr.bf16.gmra.mrb[0].mxu0 %v627
        %v663 = vpop.f32.mrb[0].mxu0
        %v664 = vadd.f32 %v575, %v663
        %v665 = vpop.f32.mrb[0].mxu0
        %v666 = vpop.f32.mrb[0].mxu0
        %v667 = vpop.f32.mrb[0].mxu0
        %668 = vdwg.mxu0
        %v669 = vtanh.pop %v664
        %v670 = vsel %vm234, %v669, 0.0
        %671 = vadd.xlane.f32.xlu0 %v670
        %v672 = vpop.xlane.xlu0 %671
        %v673 = vmul.f32 %v672, %v443
        %v674 = vmul.f32 %v669, %v669
        %v675 = vsel %vm234, %v674, 0.0
        %676 = vadd.xlane.f32.xlu0 %v675
        %v677 = vpop.xlane.xlu0 %676
        %v678 = vmul.f32 %v677, %v443
        %v679 = vmul.f32 %v673, %v673
        %v680 = vsub.f32 %v678, %v679
        %v681 = vadd.f32 %v680, 1.4133077e-06
        %v682 = vrsqrt.pop %v681
        %v683 = vmul.f32 %v682, %v576
        %v684 = vsub.f32 %v669, %v673
        %v685 = vmul.f32 %v684, %v683
        %v686 = vadd.f32 %v685, %v577
        %v687 = vld [vmem:[%s1 + $0x70] sm:$0xff]
        %v688 = vld [vmem:[%s1 + $0x78] sm:$0xff]
        %v689 = vld [vmem:[%s1 + $0x80] sm:$0xff]
        %v690 = vld [vmem:[%s1 + $0x88] sm:$0xff]
        %v691 = vld [vmem:[%s1 + $0x168] sm:$0xff]
        %v692 = vld [vmem:[%s1 + $0x198] sm:$0xff]
        %v693 = vld [vmem:[%s1 + $0x1c8] sm:$0xff]
        %v694 = vpack.c.bf16 %v686, %v686
        %v695 = vpack.c.bf16 %v688, %v687
        %v696 = vpack.c.bf16 %v690, %v689
        %v698 = vsel %vm234, %v694, 0
        %700 = vmatprep.subr.bf16.mxu0 0
        %701 = vmatpush1.bf16.msra.mxu0 %v695
        %702 = vmatprep.subr.bf16.mxu0 0
        %703 = vmatpush1.bf16.msra.mxu0 %v696
        %704 = vmatprep.subr.bf16.mxu0 0
        %705 = vmatpush1.bf16.msra.mxu0 0
        %706 = vmatprep.subr.bf16.mxu0 0
        %707 = vmatpush1.bf16.msra.mxu0 0
        %708 = vmatprep.subr.bf16.mxu0 0
        %709 = vmatpush1.bf16.msra.mxu0 0
        %710 = vmatprep.subr.bf16.mxu0 0
        %711 = vmatpush1.bf16.msra.mxu0 0
        %712 = vmatprep.subr.bf16.mxu0 0
        %713 = vmatpush1.bf16.msra.mxu0 0
        %714 = vmatprep.subr.bf16.mxu0 0
        %715 = vmatpush1.bf16.msra.mxu0 0
        %716 = vmatprep.subr.bf16.mxu0 0
        %717 = vmatpush1.bf16.msra.mxu0 0
        %718 = vmatprep.subr.bf16.mxu0 0
        %719 = vmatpush1.bf16.msra.mxu0 0
        %720 = vmatprep.subr.bf16.mxu0 0
        %721 = vmatpush1.bf16.msra.mxu0 0
        %722 = vmatprep.subr.bf16.mxu0 0
        %723 = vmatpush1.bf16.msra.mxu0 0
        %724 = vmatprep.subr.bf16.mxu0 0
        %725 = vmatpush1.bf16.msra.mxu0 0
        %726 = vmatprep.subr.bf16.mxu0 0
        %727 = vmatpush1.bf16.msra.mxu0 0
        %728 = vmatprep.subr.bf16.mxu0 0
        %729 = vmatpush1.bf16.msra.mxu0 0
        %730 = vmatprep.subr.bf16.mxu0 0
        %731 = vmatpush1.bf16.msra.mxu0 0
        %732 = vmatprep.mubr.bf16.mxu0 0
        %733 = vmatmul.mubr.bf16.gmra.mrb[0].mxu0 %v698
        %v734 = vpop.f32.mrb[0].mxu0
        %v735 = vadd.f32 %v691, %v734
        %v736 = vpop.f32.mrb[0].mxu0
        %v737 = vpop.f32.mrb[0].mxu0
        %v738 = vpop.f32.mrb[0].mxu0
        %739 = vdwg.mxu0
        %v740 = vtanh.pop %v735
        %v741 = vsel %vm234, %v740, 0.0
        %742 = vadd.xlane.f32.xlu0 %v741
        %v743 = vpop.xlane.xlu0 %742
        %v744 = vmul.f32 %v743, %v443
        %v745 = vmul.f32 %v740, %v740
        %v746 = vsel %vm234, %v745, 0.0
        %747 = vadd.xlane.f32.xlu0 %v746
        %v748 = vpop.xlane.xlu0 %747
        %v749 = vmul.f32 %v748, %v443
        %v750 = vmul.f32 %v744, %v744
        %v751 = vsub.f32 %v749, %v750
        %v752 = vadd.f32 %v751, 1.4133077e-06
        %v753 = vrsqrt.pop %v752
        %v754 = vmul.f32 %v753, %v692
        %v755 = vsub.f32 %v740, %v744
        %v756 = vmul.f32 %v755, %v754
        %v757 = vadd.f32 %v756, %v693
        %v766 = vrot.slane %v564, 7
        %v767 = vsel %vm605, %v766, %v563
        %v768 = vrot.slane %v565, 6
        %v769 = vsel %vm608, %v768, %v767
        %v770 = vrot.slane %v566, 5
        %v771 = vsel %vm611, %v770, %v769
        %v772 = vrot.slane %v567, 4
        %v773 = vsel %vm614, %v772, %v771
        %v774 = vrot.slane %v568, 3
        %v775 = vsel %vm617, %v774, %v773
        %v776 = vrot.slane %v569, 2
        %v777 = vsel %vm620, %v776, %v775
        %v778 = vrot.slane %v570, 1
        %v779 = vsel %vm623, %v778, %v777
        %v781 = vadd.f32 %v757, %v779
        %v783 = vrot.slane %v781, 7
        %v784 = vrot.slane %v781, 1
        %v785 = vrot.slane %v781, 2
        %v786 = vrot.slane %v781, 3
        %v787 = vrot.slane %v781, 4
        %v788 = vrot.slane %v781, 5
        %v789 = vrot.slane %v781, 6
        %v798 = vrot.slane %v563, 7
        %v799 = vrot.slane %v565, 7
        %v800 = vrot.slane %v566, 7
        %v801 = vrot.slane %v567, 7
        %v802 = vrot.slane %v568, 7
        %v803 = vrot.slane %v569, 7
        %v804 = vrot.slane %v570, 7
        %v813 = vsel %vm531, %v783, %v798
        %v814 = vsel %vm531, %v781, %v766
        %v815 = vsel %vm531, %v784, %v799
        %v816 = vsel %vm531, %v785, %v800
        %v817 = vsel %vm531, %v786, %v801
        %v818 = vsel %vm531, %v787, %v802
        %v819 = vsel %vm531, %v788, %v803
        %v820 = vsel %vm531, %v789, %v804
        %v821 = vld [vmem:[%s1 + $0x90] sm:$0xff]
        %v822 = vld [vmem:[%s1 + $0x98] sm:$0xff]
        %v823 = vld [vmem:[%s1 + $0xa0] sm:$0xff]
        %v824 = vld [vmem:[%s1 + $0xa8] sm:$0xff]
        %v825 = vld [vmem:[%s1 + $0x170] sm:$0xff]
        %v826 = vld [vmem:[%s1 + $0x1a0] sm:$0xff]
        %v827 = vld [vmem:[%s1 + $0x1d0] sm:$0xff]
        %v828 = vpack.c.bf16 %v813, %v813
        %v829 = vpack.c.bf16 %v814, %v814
        %v830 = vpack.c.bf16 %v815, %v815
        %v831 = vpack.c.bf16 %v816, %v816
        %v832 = vpack.c.bf16 %v817, %v817
        %v833 = vpack.c.bf16 %v818, %v818
        %v834 = vpack.c.bf16 %v819, %v819
        %v835 = vpack.c.bf16 %v820, %v820
        %v836 = vpack.c.bf16 %v822, %v821
        %v837 = vpack.c.bf16 %v824, %v823
        %v846 = vunpack.c.l.b16 %v828
        %v847 = vunpack.c.l.b16 %v829
        %v848 = vunpack.c.l.b16 %v830
        %v849 = vunpack.c.l.b16 %v831
        %v850 = vunpack.c.l.b16 %v832
        %v851 = vunpack.c.l.b16 %v833
        %v852 = vunpack.c.l.b16 %v834
        %v853 = vunpack.c.l.b16 %v835
        %v854 = vrot.slane %v846, 1
        %v855 = vsel %vm605, %v847, %v854
        %v856 = vrot.slane %v848, 7
        %v857 = vsel %vm608, %v856, %v855
        %v858 = vrot.slane %v849, 6
        %v859 = vsel %vm611, %v858, %v857
        %v860 = vrot.slane %v850, 5
        %v861 = vsel %vm614, %v860, %v859
        %v862 = vrot.slane %v851, 4
        %v863 = vsel %vm617, %v862, %v861
        %v864 = vrot.slane %v852, 3
        %v865 = vsel %vm620, %v864, %v863
        %v866 = vrot.slane %v853, 2
        %v867 = vsel %vm623, %v866, %v865
        %v868 = vpack.c.b16 %v867, %v867
        %v870 = vsel %vm234, %v868, 0
        %872 = vmatprep.subr.bf16.mxu0 0
        %873 = vmatpush1.bf16.msra.mxu0 %v836
        %874 = vmatprep.subr.bf16.mxu0 0
        %875 = vmatpush1.bf16.msra.mxu0 %v837
        %876 = vmatprep.subr.bf16.mxu0 0
        %877 = vmatpush1.bf16.msra.mxu0 0
        %878 = vmatprep.subr.bf16.mxu0 0
        %879 = vmatpush1.bf16.msra.mxu0 0
        %880 = vmatprep.subr.bf16.mxu0 0
        %881 = vmatpush1.bf16.msra.mxu0 0
        %882 = vmatprep.subr.bf16.mxu0 0
        %883 = vmatpush1.bf16.msra.mxu0 0
        %884 = vmatprep.subr.bf16.mxu0 0
        %885 = vmatpush1.bf16.msra.mxu0 0
        %886 = vmatprep.subr.bf16.mxu0 0
        %887 = vmatpush1.bf16.msra.mxu0 0
        %888 = vmatprep.subr.bf16.mxu0 0
        %889 = vmatpush1.bf16.msra.mxu0 0
        %890 = vmatprep.subr.bf16.mxu0 0
        %891 = vmatpush1.bf16.msra.mxu0 0
        %892 = vmatprep.subr.bf16.mxu0 0
        %893 = vmatpush1.bf16.msra.mxu0 0
        %894 = vmatprep.subr.bf16.mxu0 0
        %895 = vmatpush1.bf16.msra.mxu0 0
        %896 = vmatprep.subr.bf16.mxu0 0
        %897 = vmatpush1.bf16.msra.mxu0 0
        %898 = vmatprep.subr.bf16.mxu0 0
        %899 = vmatpush1.bf16.msra.mxu0 0
        %900 = vmatprep.subr.bf16.mxu0 0
        %901 = vmatpush1.bf16.msra.mxu0 0
        %902 = vmatprep.subr.bf16.mxu0 0
        %903 = vmatpush1.bf16.msra.mxu0 0
        %904 = vmatprep.mubr.bf16.mxu0 0
        %905 = vmatmul.mubr.bf16.gmra.mrb[0].mxu0 %v870
        %v906 = vpop.f32.mrb[0].mxu0
        %v907 = vadd.f32 %v825, %v906
        %v908 = vpop.f32.mrb[0].mxu0
        %v909 = vpop.f32.mrb[0].mxu0
        %v910 = vpop.f32.mrb[0].mxu0
        %911 = vdwg.mxu0
        %v912 = vtanh.pop %v907
        %v913 = vsel %vm234, %v912, 0.0
        %914 = vadd.xlane.f32.xlu0 %v913
        %v915 = vpop.xlane.xlu0 %914
        %v916 = vmul.f32 %v915, %v443
        %v917 = vmul.f32 %v912, %v912
        %v918 = vsel %vm234, %v917, 0.0
        %919 = vadd.xlane.f32.xlu0 %v918
        %v920 = vpop.xlane.xlu0 %919
        %v921 = vmul.f32 %v920, %v443
        %v922 = vmul.f32 %v916, %v916
        %v923 = vsub.f32 %v921, %v922
        %v924 = vadd.f32 %v923, 1.4133077e-06
        %v925 = vrsqrt.pop %v924
        %v926 = vmul.f32 %v925, %v826
        %v927 = vsub.f32 %v912, %v916
        %v928 = vmul.f32 %v927, %v926
        %v929 = vadd.f32 %v928, %v827
        %v930 = vld [vmem:[%s1 + $0xb0] sm:$0xff]
        %v931 = vld [vmem:[%s1 + $0xb8] sm:$0xff]
        %v932 = vld [vmem:[%s1 + $0xc0] sm:$0xff]
        %v933 = vld [vmem:[%s1 + $0xc8] sm:$0xff]
        %v934 = vld [vmem:[%s1 + $0x178] sm:$0xff]
        %v935 = vld [vmem:[%s1 + $0x1a8] sm:$0xff]
        %v936 = vld [vmem:[%s1 + $0x1d8] sm:$0xff]
        %v937 = vpack.c.bf16 %v929, %v929
        %v938 = vpack.c.bf16 %v931, %v930
        %v939 = vpack.c.bf16 %v933, %v932
        %v941 = vsel %vm234, %v937, 0
        %943 = vmatprep.subr.bf16.mxu0 0
        %944 = vmatpush1.bf16.msra.mxu0 %v938
        %945 = vmatprep.subr.bf16.mxu0 0
        %946 = vmatpush1.bf16.msra.mxu0 %v939
        %947 = vmatprep.subr.bf16.mxu0 0
        %948 = vmatpush1.bf16.msra.mxu0 0
        %949 = vmatprep.subr.bf16.mxu0 0
        %950 = vmatpush1.bf16.msra.mxu0 0
        %951 = vmatprep.subr.bf16.mxu0 0
        %952 = vmatpush1.bf16.msra.mxu0 0
        %953 = vmatprep.subr.bf16.mxu0 0
        %954 = vmatpush1.bf16.msra.mxu0 0
        %955 = vmatprep.subr.bf16.mxu0 0
        %956 = vmatpush1.bf16.msra.mxu0 0
        %957 = vmatprep.subr.bf16.mxu0 0
        %958 = vmatpush1.bf16.msra.mxu0 0
        %959 = vmatprep.subr.bf16.mxu0 0
        %960 = vmatpush1.bf16.msra.mxu0 0
        %961 = vmatprep.subr.bf16.mxu0 0
        %962 = vmatpush1.bf16.msra.mxu0 0
        %963 = vmatprep.subr.bf16.mxu0 0
        %964 = vmatpush1.bf16.msra.mxu0 0
        %965 = vmatprep.subr.bf16.mxu0 0
        %966 = vmatpush1.bf16.msra.mxu0 0
        %967 = vmatprep.subr.bf16.mxu0 0
        %968 = vmatpush1.bf16.msra.mxu0 0
        %969 = vmatprep.subr.bf16.mxu0 0
        %970 = vmatpush1.bf16.msra.mxu0 0
        %971 = vmatprep.subr.bf16.mxu0 0
        %972 = vmatpush1.bf16.msra.mxu0 0
        %973 = vmatprep.subr.bf16.mxu0 0
        %974 = vmatpush1.bf16.msra.mxu0 0
        %975 = vmatprep.mubr.bf16.mxu0 0
        %976 = vmatmul.mubr.bf16.gmra.mrb[0].mxu0 %v941
        %v977 = vpop.f32.mrb[0].mxu0
        %v978 = vadd.f32 %v934, %v977
        %v979 = vpop.f32.mrb[0].mxu0
        %v980 = vpop.f32.mrb[0].mxu0
        %v981 = vpop.f32.mrb[0].mxu0
        %982 = vdwg.mxu0
        %v983 = vtanh.pop %v978
        %v984 = vsel %vm234, %v983, 0.0
        %985 = vadd.xlane.f32.xlu0 %v984
        %v986 = vpop.xlane.xlu0 %985
        %v987 = vmul.f32 %v986, %v443
        %v988 = vmul.f32 %v983, %v983
        %v989 = vsel %vm234, %v988, 0.0
        %990 = vadd.xlane.f32.xlu0 %v989
        %v991 = vpop.xlane.xlu0 %990
        %v992 = vmul.f32 %v991, %v443
        %v993 = vmul.f32 %v987, %v987
        %v994 = vsub.f32 %v992, %v993
        %v995 = vadd.f32 %v994, 1.4133077e-06
        %v996 = vrsqrt.pop %v995
        %v997 = vmul.f32 %v996, %v935
        %v998 = vsub.f32 %v983, %v987
        %v999 = vmul.f32 %v998, %v997
        %v1000 = vadd.f32 %v999, %v936
        %v1009 = vrot.slane %v813, 1
        %v1010 = vsel %vm605, %v814, %v1009
        %v1011 = vrot.slane %v815, 7
        %v1012 = vsel %vm608, %v1011, %v1010
        %v1013 = vrot.slane %v816, 6
        %v1014 = vsel %vm611, %v1013, %v1012
        %v1015 = vrot.slane %v817, 5
        %v1016 = vsel %vm614, %v1015, %v1014
        %v1017 = vrot.slane %v818, 4
        %v1018 = vsel %vm617, %v1017, %v1016
        %v1019 = vrot.slane %v819, 3
        %v1020 = vsel %vm620, %v1019, %v1018
        %v1021 = vrot.slane %v820, 2
        %v1022 = vsel %vm623, %v1021, %v1020
        %v1024 = vadd.f32 %v1000, %v1022
        %v1026 = vrot.slane %v1024, 6
        %v1027 = vrot.slane %v1024, 7
        %v1028 = vrot.slane %v1024, 1
        %v1029 = vrot.slane %v1024, 2
        %v1030 = vrot.slane %v1024, 3
        %v1031 = vrot.slane %v1024, 4
        %v1032 = vrot.slane %v1024, 5
        %v1041 = vrot.slane %v813, 7
        %v1042 = vrot.slane %v814, 7
        %v1043 = vrot.slane %v816, 7
        %v1044 = vrot.slane %v817, 7
        %v1045 = vrot.slane %v818, 7
        %v1046 = vrot.slane %v819, 7
        %v1047 = vrot.slane %v820, 7
        %v1056 = vsel %vm531, %v1026, %v1041
        %v1057 = vsel %vm531, %v1027, %v1042
        %v1058 = vsel %vm531, %v1024, %v1011
        %v1059 = vsel %vm531, %v1028, %v1043
        %v1060 = vsel %vm531, %v1029, %v1044
        %v1061 = vsel %vm531, %v1030, %v1045
        %v1062 = vsel %vm531, %v1031, %v1046
        %v1063 = vsel %vm531, %v1032, %v1047
        %v1064 = vpack.c.bf16 %v1056, %v1056
        %v1065 = vpack.c.bf16 %v1057, %v1057
        %v1066 = vpack.c.bf16 %v1058, %v1058
        %v1067 = vpack.c.bf16 %v1059, %v1059
        %v1068 = vpack.c.bf16 %v1060, %v1060
        %v1069 = vpack.c.bf16 %v1061, %v1061
        %v1070 = vpack.c.bf16 %v1062, %v1062
        %v1071 = vpack.c.bf16 %v1063, %v1063
        %v1072 = vpack.c.bf16 %v152, %v151
        %v1073 = vpack.c.bf16 %v154, %v153
        %v1082 = vunpack.c.l.b16 %v1064
        %v1083 = vunpack.c.l.b16 %v1065
        %v1084 = vunpack.c.l.b16 %v1066
        %v1085 = vunpack.c.l.b16 %v1067
        %v1086 = vunpack.c.l.b16 %v1068
        %v1087 = vunpack.c.l.b16 %v1069
        %v1088 = vunpack.c.l.b16 %v1070
        %v1089 = vunpack.c.l.b16 %v1071
        %v1090 = vrot.slane %v1082, 2
        %v1091 = vrot.slane %v1083, 1
        %v1092 = vsel %vm605, %v1091, %v1090
        %v1093 = vsel %vm608, %v1084, %v1092
        %v1094 = vrot.slane %v1085, 7
        %v1095 = vsel %vm611, %v1094, %v1093
        %v1096 = vrot.slane %v1086, 6
        %v1097 = vsel %vm614, %v1096, %v1095
        %v1098 = vrot.slane %v1087, 5
        %v1099 = vsel %vm617, %v1098, %v1097
        %v1100 = vrot.slane %v1088, 4
        %v1101 = vsel %vm620, %v1100, %v1099
        %v1102 = vrot.slane %v1089, 3
        %v1103 = vsel %vm623, %v1102, %v1101
        %v1104 = vpack.c.b16 %v1103, %v1103
        %v1106 = vsel %vm234, %v1104, 0
        %1108 = vmatprep.subr.bf16.mxu0 0
        %1109 = vmatpush1.bf16.msra.mxu0 %v1072
        %1110 = vmatprep.subr.bf16.mxu0 0
        %1111 = vmatpush1.bf16.msra.mxu0 %v1073
        %1112 = vmatprep.subr.bf16.mxu0 0
        %1113 = vmatpush1.bf16.msra.mxu0 0
        %1114 = vmatprep.subr.bf16.mxu0 0
        %1115 = vmatpush1.bf16.msra.mxu0 0
        %1116 = vmatprep.subr.bf16.mxu0 0
        %1117 = vmatpush1.bf16.msra.mxu0 0
        %1118 = vmatprep.subr.bf16.mxu0 0
        %1119 = vmatpush1.bf16.msra.mxu0 0
        %1120 = vmatprep.subr.bf16.mxu0 0
        %1121 = vmatpush1.bf16.msra.mxu0 0
        %1122 = vmatprep.subr.bf16.mxu0 0
        %1123 = vmatpush1.bf16.msra.mxu0 0
        %1124 = vmatprep.subr.bf16.mxu0 0
        %1125 = vmatpush1.bf16.msra.mxu0 0
        %1126 = vmatprep.subr.bf16.mxu0 0
        %1127 = vmatpush1.bf16.msra.mxu0 0
        %1128 = vmatprep.subr.bf16.mxu0 0
        %1129 = vmatpush1.bf16.msra.mxu0 0
        %1130 = vmatprep.subr.bf16.mxu0 0
        %1131 = vmatpush1.bf16.msra.mxu0 0
        %1132 = vmatprep.subr.bf16.mxu0 0
        %1133 = vmatpush1.bf16.msra.mxu0 0
        %1134 = vmatprep.subr.bf16.mxu0 0
        %1135 = vmatpush1.bf16.msra.mxu0 0
        %1136 = vmatprep.subr.bf16.mxu0 0
        %1137 = vmatpush1.bf16.msra.mxu0 0
        %1138 = vmatprep.subr.bf16.mxu0 0
        %1139 = vmatpush1.bf16.msra.mxu0 0
        %1140 = vmatprep.mubr.bf16.mxu0 0
        %1141 = vmatmul.mubr.bf16.gmra.mrb[0].mxu0 %v1106
        %v1142 = vpop.f32.mrb[0].mxu0
        %v1143 = vadd.f32 %v158, %v1142
        %v1144 = vpop.f32.mrb[0].mxu0
        %v1145 = vpop.f32.mrb[0].mxu0
        %v1146 = vpop.f32.mrb[0].mxu0
        %1147 = vdwg.mxu0
        %1148 = vst.msk [vmem:[%s134] sm:$0xff] %vm234, %v1143
        %s1149 = sand.u32 %s71, 1
        %s1150 = scalar_lea.sflag [#allocation3], %s1149
        %s1151 = sand.u32 %s71, 1
        %s1152 = smul.addr %s1151, 8
        %s1153 = scalar_lea.vmem [#allocation2], %s1152
        // Predicated region
        $region29: #{liquid_nn_forward.1} parent=27 // pred_check
          %p1154 = pneg %p81
        $region30: #{liquid_nn_forward.1} parent=27 // pred_check_branch
          %1156 = sbr.rel (%p1154) target = $region32
        $region31: #{liquid_nn_forward.1} parent=27 // pred_region
          %s1158 = ssub.s32 128, 128
          %1159 = vsyncadd %s1150, %s1158
          %s1160 = smul.addr %s16, 128
          %s1161 = scalar_lea.hbm %s2, %s1160
          %s1163 = sshll.u32 %s1153, 4
          %s1164 = int_to_ptr.vmem [resolvable:$true] %s1163
          %1166 = dma.vmem_to_hbm [thread:$0]  %s1164, 128, %s1161, %s1150
        $region32: #{liquid_nn_forward.1} parent=27 // pred_fallthru
          _
      $region28: #{liquid_nn_forward.1} parent=5 // pred_fallthru
        _
      %p1167 = scmp.le.s32.totalorder 2, %s11
      // Predicated region
      $region33: #{liquid_nn_forward.1} parent=5 // pred_check
        %p1168 = pneg %p1167
      $region34: #{liquid_nn_forward.1} parent=5 // pred_check_branch
        %1170 = sbr.rel (%p1168) target = $region36
      $region35: #{liquid_nn_forward.1} parent=5 // pred_region
        %s1171 = ssub.s32 %s11, 2
        // Predicated region
        $region37: #{liquid_nn_forward.1} parent=35 // pred_check
          %p1172 = pneg %p87
        $region38: #{liquid_nn_forward.1} parent=35 // pred_check_branch
          %1174 = sbr.rel (%p1172) target = $region40
        $region39: #{liquid_nn_forward.1} parent=35 // pred_region
          %s1175 = sand.u32 %s72, 1
          %s1176 = scalar_lea.sflag [#allocation3], %s1175
          %s1177 = sand.u32 %s72, 1
          %s1178 = smul.addr %s1177, 8
          %s1179 = scalar_lea.vmem [#allocation2], %s1178
          %1180 = dma.done %s1176, 128
        $region40: #{liquid_nn_forward.1} parent=35 // pred_fallthru
          _
      $region36: #{liquid_nn_forward.1} parent=5 // pred_fallthru
        _
    $region6: #{liquid_nn_forward.1} parent=1 // loop_footer
      %s15 = sadd.s32 1, %s11
    $region7: #{liquid_nn_forward.1} parent=1 // loop_footer_branch
      %10 = sbr.rel target = $region3
    $region8: #{liquid_nn_forward.1} parent=1 // loop_exit
      _
    %1181 = vsyncpa [#allocation3], 1
    %s1182 = scalar_lea.sflag [#allocation3], 1
    %1183 = vsyncpa %s1182, 1

</llo_original>
